<compile_context>
chip_gen: v6e
topology: v6e:2x2x1
jax: 0.10.0
libtpu: 0.0.40
codegen_flags: <defaults>
</compile_context>

<pallas_src>
import math

import jax
import jax.numpy as jnp
from jax import lax
from jax.experimental import pallas as pl
from jax.experimental.pallas import tpu as pltpu


def _round_up(x, m):
    return ((x + m - 1) // m) * m


def _divisors(n):
    out = set()
    i = 1
    while i * i <= n:
        if n % i == 0:
            out.add(i)
            out.add(n // i)
        i += 1
    return sorted(out)


def _make_denoiser_kernel(g, tile_p, chunk, unroll):
    """Build a kernel over one (g-slab, tile_p-lane) block; pixels live on the lane axis."""
    n_chunks = tile_p // chunk
    total = g * n_chunks

    def kernel(x_ref, t_ref, cb_ref, f_ref, ph_ref, wxT_ref, wcT_ref, o_ref):
        # x_ref:   [g, d_in,  tile_p]   pixel features
        # t_ref:   [g, 1,     tile_p]   per-pixel timestep scalar
        # cb_ref:  [BT, d_out, 1]       resident per-(batch,time) class bias = cemb@wc + bx
        # f_ref:   [d_c, 1]             duplicated sinusoid frequencies
        # ph_ref:  [d_c, 1]             phase column (0 for sin half, pi/2 for cos half)
        # wxT_ref: [d_out, d_in]        wx^T
        # wcT_ref: [d_out, d_c]         wc^T
        # o_ref:   [g, d_out, tile_p]
        i = pl.program_id(0)
        wxT = wxT_ref[...]
        wcT = wcT_ref[...]
        f = f_ref[...]
        ph = ph_ref[...]

        def body(c, carry):
            if g == 1:
                s = 0
            elif n_chunks == 1:
                s = c
            else:
                s = c // n_chunks
            if n_chunks == 1:
                off = 0
            else:
                off = pl.multiple_of((c % n_chunks) * chunk, chunk)

            tt = t_ref[s, :, pl.ds(off, chunk)]                      # [1, chunk]
            emb = jnp.sin(f * tt + ph)                               # [d_c, chunk] (EUP)
            xx = x_ref[s, :, pl.ds(off, chunk)]                      # [d_in, chunk]
            y = jnp.dot(wxT, xx, preferred_element_type=jnp.float32)
            y = y + jnp.dot(wcT, emb, preferred_element_type=jnp.float32)
            y = y + cb_ref[i * g + s]                                # [d_out,1] over lanes
            o_ref[s, :, pl.ds(off, chunk)] = y.astype(o_ref.dtype)
            return carry

        lax.fori_loop(0, total, body, 0, unroll=unroll)

    return kernel


def denoiser_forward(x, t, label, params, *, d_t,
                     max_pixel_tile=16384,
                     target_step_bytes=2 << 20,
                     max_step_bytes=4 << 20):
    """x: [B,T,d_in,H,W] f32, t: [B,T,1,H,W] f32, label: [B] int32."""
    B, T, d_in, H, W = x.shape
    d_out = params["wx"].shape[1]
    d_c = d_t
    assert d_c % 2 == 0, "sinusoidal embedding requires even d_c"
    d_half = d_c // 2
    BT = B * T
    HW = H * W

    bytes_per_pixel_slab = (d_in + 1 + d_out) * 4  # streamed bytes per pixel per slab

    # ---- pixel (lane) tile selection: pad to a 128 multiple, avoid small-tile cliff ----
    hw_pad = _round_up(HW, 128)
    cap_by_bytes = max(128, (max_step_bytes // bytes_per_pixel_slab) // 128 * 128)
    hi = min(_round_up(max_pixel_tile, 128), cap_by_bytes, hw_pad)
    lo = min(512, hi)
    tile_p, best_key = None, None
    for cand in range(lo, hi + 1, 128):
        key = (_round_up(hw_pad, cand), -cand)   # minimize padded total, prefer big tiles
        if best_key is None or key < best_key:
            tile_p, best_key = cand, key
    hw_pad = _round_up(hw_pad, tile_p)
    n_ptiles = hw_pad // tile_p

    # ---- fold g consecutive (b,t) slabs into each grid step (amortize step overhead) ----
    divs = _divisors(BT)
    g = 1
    for d in divs:
        if d > 1 and d * tile_p * bytes_per_pixel_slab > max_step_bytes:
            break
        g = d
        if d * tile_p * bytes_per_pixel_slab >= target_step_bytes:
            break
    # keep >= 2 grid steps along a parallel axis (v7x has 2 TensorCores)
    while g > 1 and (BT // g) * n_ptiles < 2:
        g = max(d for d in divs if d < g)

    # ---- in-kernel pixel sub-chunk: bounds the [d_c, chunk] sin temp to ~16 vregs ----
    chunk = 512
    while chunk > 128 and (d_c * chunk * 4 > 64 * 1024 or tile_p % chunk != 0):
        chunk -= 128
    if tile_p % chunk != 0:
        chunk = 128
    chunk = min(chunk, tile_p)
    total_chunks = g * (tile_p // chunk)
    unroll = total_chunks <= 8

    # ---- inputs: pixels land on the lane axis via free reshapes; pad pixel axis if needed ----
    x_flat = x.reshape(BT, d_in, HW)
    t_flat = t.reshape(BT, 1, HW)
    if hw_pad != HW:
        pad = hw_pad - HW
        x_flat = jnp.pad(x_flat, ((0, 0), (0, 0), (0, pad)))
        t_flat = jnp.pad(t_flat, ((0, 0), (0, 0), (0, pad)))

    # ---- embed_conditioning hoisted: class term folds into a tiny per-(b,t) output bias ----
    cemb = params["class_table"][label]                       # [B, d_c]
    class_bias = cemb @ params["wc"] + params["bx"]           # [B, d_out]
    cb_bt = jnp.broadcast_to(class_bias[:, None, :], (B, T, d_out)).reshape(BT, d_out)[..., None]

    # ---- sinusoidal embedding as one fused sin: cos(a) = sin(a + pi/2) ----
    freqs = jnp.exp(-math.log(10000.0) * jnp.arange(d_half, dtype=jnp.float32) / d_half)
    freqs2 = jnp.concatenate([freqs, freqs])[:, None]         # [d_c, 1]
    phase = jnp.concatenate([jnp.zeros((d_half,), jnp.float32),
                             jnp.full((d_half,), jnp.pi / 2, jnp.float32)])[:, None]

    wxT = params["wx"].T                                      # [d_out, d_in]
    wcT = params["wc"].T                                      # [d_out, d_c]

    grid = (BT // g, n_ptiles)

    vmem_need = 2 * g * (d_in + 1 + d_out) * tile_p * 4 \
        + (BT * d_out + 2 * d_c + d_out * (d_in + d_c)) * 4
    vmem_limit = int(min(max(2 * vmem_need, 16 << 20), 32 << 20))  # fits v7x's 64 MiB VMEM

    n_pix = BT * hw_pad
    cost = pl.CostEstimate(
        flops=int(n_pix * (2 * d_in * d_out + 2 * d_c * d_out + 2 * d_c + d_out)),
        transcendentals=int(n_pix * d_c),
        bytes_accessed=int(4 * (n_pix * (d_in + 1 + d_out) + BT * d_out
                                + 2 * d_c + d_out * (d_in + d_c))),
    )

    kernel = _make_denoiser_kernel(g, tile_p, chunk, unroll)

    out_flat = pl.pallas_call(
        kernel,
        out_shape=jax.ShapeDtypeStruct((BT, d_out, hw_pad), jnp.float32),
        grid_spec=pltpu.PrefetchScalarGridSpec(
            num_scalar_prefetch=0,
            grid=grid,
            in_specs=[
                pl.BlockSpec((g, d_in, tile_p), lambda i, j: (i, 0, j)),
                pl.BlockSpec((g, 1, tile_p), lambda i, j: (i, 0, j)),
                pl.BlockSpec((BT, d_out, 1), lambda i, j: (0, 0, 0)),   # resident bias
                pl.BlockSpec((d_c, 1), lambda i, j: (0, 0)),
                pl.BlockSpec((d_c, 1), lambda i, j: (0, 0)),
                pl.BlockSpec((d_out, d_in), lambda i, j: (0, 0)),
                pl.BlockSpec((d_out, d_c), lambda i, j: (0, 0)),
            ],
            out_specs=pl.BlockSpec((g, d_out, tile_p), lambda i, j: (i, 0, j)),
        ),
        compiler_params=pltpu.CompilerParams(
            dimension_semantics=("parallel", "parallel"),
            vmem_limit_bytes=vmem_limit,
        ),
        cost_estimate=cost,
    )(x_flat, t_flat, cb_bt, freqs2, phase, wxT, wcT)

    out = out_flat[:, :, :HW] if hw_pad != HW else out_flat
    return out.reshape(B, T, d_out, H, W)


def denoiser_reference(x, t, label, params, *, d_t):
    """Pure-JAX reference with identical semantics (channels-last math)."""
    B, T, d_in, H, W = x.shape
    d_half = d_t // 2
    x_cl = jnp.transpose(x, (0, 1, 3, 4, 2))                  # [B,T,H,W,d_in]
    t_cl = jnp.transpose(t, (0, 1, 3, 4, 2))                  # [B,T,H,W,1]
    freqs = jnp.exp(
        -math.log(10000.0) * jnp.arange(d_half, dtype=jnp.float32) / d_half
    )
    ang = t_cl * freqs                                        # [B,T,H,W,d_half]
    t_emb = jnp.concatenate([jnp.sin(ang), jnp.cos(ang)], axis=-1)
    cemb = params["class_table"][label][:, None, None, None, :]
    cond = t_emb + cemb
    y = x_cl @ params["wx"] + cond @ params["wc"] + params["bx"]
    return jnp.transpose(y, (0, 1, 4, 2, 3))


def init_params(key, *, d_in, d_out, d_c, num_classes):
    k1, k2, k3 = jax.random.split(key, 3)
    return {
        "wx": jax.random.normal(k1, (d_in, d_out), jnp.float32) * 0.1,
        "bx": jnp.zeros((1, d_out), jnp.float32),
        "wc": jax.random.normal(k2, (d_c, d_out), jnp.float32) * 0.1,
        "class_table": jax.random.normal(k3, (num_classes, d_c), jnp.float32) * 0.02,
    }


if __name__ == "__main__":
    B, T, d_in, d_out, H, W = 2, 2, 4, 4, 16, 16
    num_classes = 10
    d_c = d_t = 32  # d_t == d_c per the module's d_t property

    key = jax.random.PRNGKey(0)
    kx, kt, kl, kp = jax.random.split(key, 4)

    x = jax.random.normal(kx, (B, T, d_in, H, W), jnp.float32)
    t = jax.random.uniform(kt, (B, T, 1, H, W), jnp.float32) * 1000.0
    label = jax.random.randint(kl, (B,), 0, num_classes, jnp.int32)
    params = init_params(kp, d_in=d_in, d_out=d_out, d_c=d_c, num_classes=num_classes)

    out = denoiser_forward(x, t, label, params, d_t=d_t)
    out = jax.block_until_ready(out)

    ref = denoiser_reference(x, t, label, params, d_t=d_t)
    assert out.shape == (B, T, d_out, H, W)
    # Tolerance loosened slightly: angles reach ~1000 rad, where f32 range reduction of the
    # fused sin(a + pi/2) path vs the reference cos(a) can exceed 1e-4.
    assert jnp.allclose(out, ref, atol=2e-3, rtol=1e-3), "mismatch vs reference"

    print("KERNEL_OK")
</pallas_src>

<mosaic_0001>
module attributes {stable_mosaic.version = 11 : i64} {
  func.func @kernel(%arg0: i32, %arg1: i32, %arg2: memref<2x4x256xf32, #tpu.memory_space<vmem>>, %arg3: memref<2x1x256xf32, #tpu.memory_space<vmem>>, %arg4: memref<4x4x1xf32, #tpu.memory_space<vmem>>, %arg5: memref<32x1xf32, #tpu.memory_space<vmem>>, %arg6: memref<32x1xf32, #tpu.memory_space<vmem>>, %arg7: memref<4x4xf32, #tpu.memory_space<vmem>>, %arg8: memref<4x32xf32, #tpu.memory_space<vmem>>, %arg9: memref<2x4x256xf32, #tpu.memory_space<vmem>>) attributes {dimension_semantics = [#tpu.dimension_semantics<parallel>, #tpu.dimension_semantics<parallel>], iteration_bounds = array<i64: 2, 1>, scalar_prefetch = 0 : i64, scratch_operands = 0 : i64, tpu.core_type = #tpu.core_type<tc>, window_params = [{transform_indices = @transform_0, window_bounds = array<i64: 2, 4, 256>}, {transform_indices = @transform_1, window_bounds = array<i64: 2, 1, 256>}, {pipeline_mode = #tpu.pipeline_mode<synchronous>, transform_indices = @transform_2, window_bounds = array<i64: 4, 4, 1>}, {pipeline_mode = #tpu.pipeline_mode<synchronous>, transform_indices = @transform_3, window_bounds = array<i64: 32, 1>}, {pipeline_mode = #tpu.pipeline_mode<synchronous>, transform_indices = @transform_4, window_bounds = array<i64: 32, 1>}, {pipeline_mode = #tpu.pipeline_mode<synchronous>, transform_indices = @transform_5, window_bounds = array<i64: 4, 4>}, {pipeline_mode = #tpu.pipeline_mode<synchronous>, transform_indices = @transform_6, window_bounds = array<i64: 4, 32>}, {transform_indices = @transform_7, window_bounds = array<i64: 2, 4, 256>}]} {
    %c0 = arith.constant 0 : index
    %c0_0 = arith.constant 0 : index
    %0 = vector.load %arg7[%c0, %c0_0] : memref<4x4xf32, #tpu.memory_space<vmem>>, vector<4x4xf32>
    %c0_1 = arith.constant 0 : index
    %c0_2 = arith.constant 0 : index
    %1 = vector.load %arg8[%c0_1, %c0_2] : memref<4x32xf32, #tpu.memory_space<vmem>>, vector<4x32xf32>
    %c0_3 = arith.constant 0 : index
    %c0_4 = arith.constant 0 : index
    %2 = vector.load %arg5[%c0_3, %c0_4] : memref<32x1xf32, #tpu.memory_space<vmem>>, vector<32x1xf32>
    %c0_5 = arith.constant 0 : index
    %c0_6 = arith.constant 0 : index
    %3 = vector.load %arg6[%c0_5, %c0_6] : memref<32x1xf32, #tpu.memory_space<vmem>>, vector<32x1xf32>
    %c0_i32 = arith.constant 0 : i32
    %4 = arith.index_cast %c0_i32 : i32 to index
    %c0_7 = arith.constant 0 : index
    %c0_8 = arith.constant 0 : index
    %5 = vector.load %arg3[%4, %c0_7, %c0_8] : memref<2x1x256xf32, #tpu.memory_space<vmem>>, vector<1x1x256xf32>
    %6 = vector.shape_cast %5 : vector<1x1x256xf32> to vector<1x256xf32>
    %7 = vector.broadcast %2 : vector<32x1xf32> to vector<32x256xf32>
    %8 = vector.broadcast %6 : vector<1x256xf32> to vector<32x256xf32>
    %9 = arith.mulf %7, %8 : vector<32x256xf32>
    %10 = vector.broadcast %3 : vector<32x1xf32> to vector<32x256xf32>
    %11 = arith.addf %9, %10 : vector<32x256xf32>
    %12 = math.sin %11 : vector<32x256xf32>
    %13 = arith.index_cast %c0_i32 : i32 to index
    %c0_9 = arith.constant 0 : index
    %c0_10 = arith.constant 0 : index
    %14 = vector.load %arg2[%13, %c0_9, %c0_10] : memref<2x4x256xf32, #tpu.memory_space<vmem>>, vector<1x4x256xf32>
    %15 = vector.shape_cast %14 : vector<1x4x256xf32> to vector<4x256xf32>
    %cst = arith.constant dense<0.000000e+00> : vector<4x256xf32>
    %16 = tpu.matmul %0, %15, %cst {dimension_numbers = #tpu.dot_dimension_numbers<[1], [0], [0], [1], [0, 0, 1, 1], [], []>} : vector<4x4xf32>, vector<4x256xf32>, vector<4x256xf32> -> vector<4x256xf32>
    %cst_11 = arith.constant dense<0.000000e+00> : vector<4x256xf32>
    %17 = tpu.matmul %1, %12, %cst_11 {dimension_numbers = #tpu.dot_dimension_numbers<[1], [0], [0], [1], [0, 0, 1, 1], [], []>} : vector<4x32xf32>, vector<32x256xf32>, vector<4x256xf32> -> vector<4x256xf32>
    %18 = arith.addf %16, %17 : vector<4x256xf32>
    %c2_i32 = arith.constant 2 : i32
    %19 = arith.muli %arg0, %c2_i32 : i32
    %20 = arith.addi %19, %c0_i32 : i32
    %21 = arith.index_cast %20 : i32 to index
    %c0_12 = arith.constant 0 : index
    %c0_13 = arith.constant 0 : index
    %22 = vector.load %arg4[%21, %c0_12, %c0_13] : memref<4x4x1xf32, #tpu.memory_space<vmem>>, vector<1x4x1xf32>
    %23 = vector.shape_cast %22 : vector<1x4x1xf32> to vector<4x1xf32>
    %24 = vector.broadcast %23 : vector<4x1xf32> to vector<4x256xf32>
    %25 = arith.addf %18, %24 : vector<4x256xf32>
    %26 = arith.index_cast %c0_i32 : i32 to index
    %c0_14 = arith.constant 0 : index
    %c0_15 = arith.constant 0 : index
    %27 = vector.load %arg9[%26, %c0_14, %c0_15] : memref<2x4x256xf32, #tpu.memory_space<vmem>>, vector<1x4x256xf32>
    %28 = vector.shape_cast %27 : vector<1x4x256xf32> to vector<4x256xf32>
    %29 = vector.shape_cast %25 : vector<4x256xf32> to vector<1x4x256xf32>
    tpu.vector_store %arg9[%26, %c0_14, %c0_15], %29 {strides = array<i32>} : memref<2x4x256xf32, #tpu.memory_space<vmem>>, vector<1x4x256xf32>,
    %c1_i32 = arith.constant 1 : i32
    %30 = arith.index_cast %c1_i32 : i32 to index
    %c0_16 = arith.constant 0 : index
    %c0_17 = arith.constant 0 : index
    %31 = vector.load %arg3[%30, %c0_16, %c0_17] : memref<2x1x256xf32, #tpu.memory_space<vmem>>, vector<1x1x256xf32>
    %32 = vector.shape_cast %31 : vector<1x1x256xf32> to vector<1x256xf32>
    %33 = vector.broadcast %2 : vector<32x1xf32> to vector<32x256xf32>
    %34 = vector.broadcast %32 : vector<1x256xf32> to vector<32x256xf32>
    %35 = arith.mulf %33, %34 : vector<32x256xf32>
    %36 = vector.broadcast %3 : vector<32x1xf32> to vector<32x256xf32>
    %37 = arith.addf %35, %36 : vector<32x256xf32>
    %38 = math.sin %37 : vector<32x256xf32>
    %39 = arith.index_cast %c1_i32 : i32 to index
    %c0_18 = arith.constant 0 : index
    %c0_19 = arith.constant 0 : index
    %40 = vector.load %arg2[%39, %c0_18, %c0_19] : memref<2x4x256xf32, #tpu.memory_space<vmem>>, vector<1x4x256xf32>
    %41 = vector.shape_cast %40 : vector<1x4x256xf32> to vector<4x256xf32>
    %cst_20 = arith.constant dense<0.000000e+00> : vector<4x256xf32>
    %42 = tpu.matmul %0, %41, %cst_20 {dimension_numbers = #tpu.dot_dimension_numbers<[1], [0], [0], [1], [0, 0, 1, 1], [], []>} : vector<4x4xf32>, vector<4x256xf32>, vector<4x256xf32> -> vector<4x256xf32>
    %cst_21 = arith.constant dense<0.000000e+00> : vector<4x256xf32>
    %43 = tpu.matmul %1, %38, %cst_21 {dimension_numbers = #tpu.dot_dimension_numbers<[1], [0], [0], [1], [0, 0, 1, 1], [], []>} : vector<4x32xf32>, vector<32x256xf32>, vector<4x256xf32> -> vector<4x256xf32>
    %44 = arith.addf %42, %43 : vector<4x256xf32>
    %c2_i32_22 = arith.constant 2 : i32
    %45 = arith.muli %arg0, %c2_i32_22 : i32
    %46 = arith.addi %45, %c1_i32 : i32
    %47 = arith.index_cast %46 : i32 to index
    %c0_23 = arith.constant 0 : index
    %c0_24 = arith.constant 0 : index
    %48 = vector.load %arg4[%47, %c0_23, %c0_24] : memref<4x4x1xf32, #tpu.memory_space<vmem>>, vector<1x4x1xf32>
    %49 = vector.shape_cast %48 : vector<1x4x1xf32> to vector<4x1xf32>
    %50 = vector.broadcast %49 : vector<4x1xf32> to vector<4x256xf32>
    %51 = arith.addf %44, %50 : vector<4x256xf32>
    %52 = arith.index_cast %c1_i32 : i32 to index
    %c0_25 = arith.constant 0 : index
    %c0_26 = arith.constant 0 : index
    %53 = vector.load %arg9[%52, %c0_25, %c0_26] : memref<2x4x256xf32, #tpu.memory_space<vmem>>, vector<1x4x256xf32>
    %54 = vector.shape_cast %53 : vector<1x4x256xf32> to vector<4x256xf32>
    %55 = vector.shape_cast %51 : vector<4x256xf32> to vector<1x4x256xf32>
    tpu.vector_store %arg9[%52, %c0_25, %c0_26], %55 {strides = array<i32>} : memref<2x4x256xf32, #tpu.memory_space<vmem>>, vector<1x4x256xf32>,
    %c2_i32_27 = arith.constant 2 : i32
    return
  }
  func.func @transform_0(%arg0: i32, %arg1: i32) -> (i32, i32, i32) {
    %c0_i32 = arith.constant 0 : i32
    %c0_i32_0 = arith.constant 0 : i32
    return %arg0, %c0_i32, %arg1 : i32, i32, i32
  }
  func.func @transform_1(%arg0: i32, %arg1: i32) -> (i32, i32, i32) {
    %c0_i32 = arith.constant 0 : i32
    %c0_i32_0 = arith.constant 0 : i32
    return %arg0, %c0_i32, %arg1 : i32, i32, i32
  }
  func.func @transform_2(%arg0: i32, %arg1: i32) -> (i32, i32, i32) {
    %c0_i32 = arith.constant 0 : i32
    %c0_i32_0 = arith.constant 0 : i32
    %c0_i32_1 = arith.constant 0 : i32
    %c0_i32_2 = arith.constant 0 : i32
    return %c0_i32, %c0_i32_0, %c0_i32_1 : i32, i32, i32
  }
  func.func @transform_3(%arg0: i32, %arg1: i32) -> (i32, i32) {
    %c0_i32 = arith.constant 0 : i32
    %c0_i32_0 = arith.constant 0 : i32
    %c0_i32_1 = arith.constant 0 : i32
    return %c0_i32, %c0_i32_0 : i32, i32
  }
  func.func @transform_4(%arg0: i32, %arg1: i32) -> (i32, i32) {
    %c0_i32 = arith.constant 0 : i32
    %c0_i32_0 = arith.constant 0 : i32
    %c0_i32_1 = arith.constant 0 : i32
    return %c0_i32, %c0_i32_0 : i32, i32
  }
  func.func @transform_5(%arg0: i32, %arg1: i32) -> (i32, i32) {
    %c0_i32 = arith.constant 0 : i32
    %c0_i32_0 = arith.constant 0 : i32
    %c0_i32_1 = arith.constant 0 : i32
    return %c0_i32, %c0_i32_0 : i32, i32
  }
  func.func @transform_6(%arg0: i32, %arg1: i32) -> (i32, i32) {
    %c0_i32 = arith.constant 0 : i32
    %c0_i32_0 = arith.constant 0 : i32
    %c0_i32_1 = arith.constant 0 : i32
    return %c0_i32, %c0_i32_0 : i32, i32
  }
  func.func @transform_7(%arg0: i32, %arg1: i32) -> (i32, i32, i32) {
    %c0_i32 = arith.constant 0 : i32
    %c0_i32_0 = arith.constant 0 : i32
    return %arg0, %c0_i32, %arg1 : i32, i32, i32
  }
}

</mosaic_0001>

<llo_original>
// kernel: tpu_custom_call.1
$region0: #{tpu_custom_call.1}
  #allocation0 [shape = 'u32[]', space=smem, size = 0x4, offset = 0x4, fixed_abs, tag = 'smem constant byte address 0x4 - core index']
  #allocation1 [shape = 'u32[144,128]{1,0:T(1,128)}', space=vmem, size = 0x12000, scoped, tag = 'internal scratch']
  %s0 = inlined_call_operand.vmem [shape: f32[4,4,256], index: 0, kind: input, shape index: {}]
  %s1 = inlined_call_operand.vmem [shape: f32[4,1,256], index: 1, kind: input, shape index: {}]
  %s2 = inlined_call_operand.vmem [shape: f32[4,4,1], index: 2, kind: input, shape index: {}]
  %s3 = inlined_call_operand.vmem [shape: f32[32,1], index: 3, kind: input, shape index: {}]
  %s4 = inlined_call_operand.vmem [shape: f32[32,1], index: 4, kind: input, shape index: {}]
  %s5 = inlined_call_operand.vmem [shape: f32[4,4], index: 5, kind: input, shape index: {}]
  %s6 = inlined_call_operand.vmem [shape: f32[4,32], index: 6, kind: input, shape index: {}]
  %s7 = inlined_call_operand.hbm [shape: f32[4,4,256], index: 7, kind: output, shape index: {}]
  %s8 = sld [smem:[#allocation0]]
  $region61: #{tpu_custom_call.1} parent=0
    _
  %s10 = ssub.s32 1, %s8
  %s11 = scalar_select 0, %s10, %s8
  $region1: #{tpu_custom_call.1} parent=0
    #allocation2 [shape = 'u8[16384]{0}', space=vmem, size = 0x4000, scoped, tag = 'output window, operand 0']
    #allocation3 [shape = 's32[2]{0}', space=sflag, size = 0x8, scoped, tag = 'scoped memory for tpu_custom_call.1']
    %12 = vsyncpa [#allocation3], 0
    %s13 = scalar_lea.sflag [#allocation3], 1
    %14 = vsyncpa %s13, 0
    loop: start=0, step=1, limit=4
    $region2: #{tpu_custom_call.1} parent=1 // loop_pre_header
      _
    $region3: #{tpu_custom_call.1} parent=1 // loop_header
      %s16 = sphi 0, %s20
      %p17 = scmp.ge.s32.totalorder %s16, 4
      %s23 = sphi 0, %s35
      %s24 = sphi 0, %s31
      %s25 = sphi 0, %s23
      %s26 = sphi 0, %s24
      %s27 = sphi 0, %s25
      %s28 = sphi 0, %s26
      %s40 = sphi 0, %s42
      %s43 = sphi 0, %s40
      %s44 = sphi 0, %s43
      %s60 = sphi 0, %s44
      %s68 = sphi 0, %s70
      %s71 = sphi 0, %s68
      %s72 = sphi 0, %s71
      %s88 = sphi 0, %s72
      %s92 = sphi 0, %s92
      %s94 = sphi 0, %s92
      %s95 = sphi 0, %s94
      %s109 = sphi 0, %s95
      %s113 = sphi 0, %s113
      %s115 = sphi 0, %s113
      %s116 = sphi 0, %s115
      %s130 = sphi 0, %s116
      %s134 = sphi 0, %s134
      %s136 = sphi 0, %s134
      %s137 = sphi 0, %s136
      %s151 = sphi 0, %s137
      %s155 = sphi 0, %s155
      %s157 = sphi 0, %s155
      %s158 = sphi 0, %s157
      %s172 = sphi 0, %s158
      %s176 = sphi 0, %s176
      %s178 = sphi 0, %s176
      %s179 = sphi 0, %s178
      %s193 = sphi 0, %s179
      %s201 = sphi 0, %s203
      %s204 = sphi 0, %s201
      %s205 = sphi 0, %s204
      %s221 = sphi 0, %s205
    $region4: #{tpu_custom_call.1} parent=1 // loop_header_branch
      %19 = sbr.rel (%p17) target = $region8
    $region5: #{tpu_custom_call.1} parent=1 // loop_body
      %s21 = ssub.s32 %s16, 1
      %s22 = ssub.s32 %s16, 2
      %s29 = sadd.s32 1, %s24
      %p30 = scmp.ge.s32.totalorder %s29, 1
      %s31 = scalar_select %p30, 0, %s29
      %s32 = sadd.s32 1, %s23
      %s33 = scalar_select %p30, %s32, %s23
      %p34 = scmp.ge.s32.totalorder %s33, 2
      %s35 = scalar_select %p34, 0, %s33
      %s36 = ssub.s32 %s23, %s35
      %s37 = ssub.s32 %s24, %s31
      %s38 = sor.u32 %s36, %s37
      %p39 = scmp.eq.s32.totalorder %s38, 0
      %s41 = sadd.s32 %s40, 1
      %s42 = scalar_select %p39, %s40, %s41
      %p45 = pneg %p39
      %p46 = scmp.eq.s32.totalorder %s16, 1
      %p47 = por %p45, %p46
      %p48 = scmp.ne.s32.totalorder %s40, %s43
      %p49 = scmp.eq.s32.totalorder %s16, 0
      %p50 = por %p48, %p49
      %p51 = scmp.ne.s32.totalorder %s40, %s43
      %p52 = scmp.eq.s32.totalorder %s21, 1
      %p53 = por %p51, %p52
      %p54 = scmp.ne.s32.totalorder %s43, %s44
      %p55 = scmp.eq.s32.totalorder %s21, 0
      %p56 = por %p54, %p55
      %p57 = scmp.ne.s32.totalorder %s43, %s44
      %p58 = scmp.eq.s32.totalorder %s22, 1
      %p59 = por %p57, %p58
      %p61 = scmp.ne.s32.totalorder %s44, %s60
      %p62 = scmp.eq.s32.totalorder %s22, 0
      %p63 = por %p61, %p62
      %s64 = ssub.s32 %s23, %s35
      %s65 = ssub.s32 %s24, %s31
      %s66 = sor.u32 %s64, %s65
      %p67 = scmp.eq.s32.totalorder %s66, 0
      %s69 = sadd.s32 %s68, 1
      %s70 = scalar_select %p67, %s68, %s69
      %p73 = pneg %p67
      %p74 = scmp.eq.s32.totalorder %s16, 1
      %p75 = por %p73, %p74
      %p76 = scmp.ne.s32.totalorder %s68, %s71
      %p77 = scmp.eq.s32.totalorder %s16, 0
      %p78 = por %p76, %p77
      %p79 = scmp.ne.s32.totalorder %s68, %s71
      %p80 = scmp.eq.s32.totalorder %s21, 1
      %p81 = por %p79, %p80
      %p82 = scmp.ne.s32.totalorder %s71, %s72
      %p83 = scmp.eq.s32.totalorder %s21, 0
      %p84 = por %p82, %p83
      %p85 = scmp.ne.s32.totalorder %s71, %s72
      %p86 = scmp.eq.s32.totalorder %s22, 1
      %p87 = por %p85, %p86
      %p89 = scmp.ne.s32.totalorder %s72, %s88
      %p90 = scmp.eq.s32.totalorder %s22, 0
      %p91 = por %p89, %p90
      %s93 = sadd.s32 %s92, 1
      %p96 = scmp.eq.s32.totalorder %s16, 1
      %p97 = scmp.ne.s32.totalorder %s92, %s94
      %p98 = scmp.eq.s32.totalorder %s16, 0
      %p99 = por %p97, %p98
      %p100 = scmp.ne.s32.totalorder %s92, %s94
      %p101 = scmp.eq.s32.totalorder %s21, 1
      %p102 = por %p100, %p101
      %p103 = scmp.ne.s32.totalorder %s94, %s95
      %p104 = scmp.eq.s32.totalorder %s21, 0
      %p105 = por %p103, %p104
      %p106 = scmp.ne.s32.totalorder %s94, %s95
      %p107 = scmp.eq.s32.totalorder %s22, 1
      %p108 = por %p106, %p107
      %p110 = scmp.ne.s32.totalorder %s95, %s109
      %p111 = scmp.eq.s32.totalorder %s22, 0
      %p112 = por %p110, %p111
      %s114 = sadd.s32 %s113, 1
      %p117 = scmp.eq.s32.totalorder %s16, 1
      %p118 = scmp.ne.s32.totalorder %s113, %s115
      %p119 = scmp.eq.s32.totalorder %s16, 0
      %p120 = por %p118, %p119
      %p121 = scmp.ne.s32.totalorder %s113, %s115
      %p122 = scmp.eq.s32.totalorder %s21, 1
      %p123 = por %p121, %p122
      %p124 = scmp.ne.s32.totalorder %s115, %s116
      %p125 = scmp.eq.s32.totalorder %s21, 0
      %p126 = por %p124, %p125
      %p127 = scmp.ne.s32.totalorder %s115, %s116
      %p128 = scmp.eq.s32.totalorder %s22, 1
      %p129 = por %p127, %p128
      %p131 = scmp.ne.s32.totalorder %s116, %s130
      %p132 = scmp.eq.s32.totalorder %s22, 0
      %p133 = por %p131, %p132
      %s135 = sadd.s32 %s134, 1
      %p138 = scmp.eq.s32.totalorder %s16, 1
      %p139 = scmp.ne.s32.totalorder %s134, %s136
      %p140 = scmp.eq.s32.totalorder %s16, 0
      %p141 = por %p139, %p140
      %p142 = scmp.ne.s32.totalorder %s134, %s136
      %p143 = scmp.eq.s32.totalorder %s21, 1
      %p144 = por %p142, %p143
      %p145 = scmp.ne.s32.totalorder %s136, %s137
      %p146 = scmp.eq.s32.totalorder %s21, 0
      %p147 = por %p145, %p146
      %p148 = scmp.ne.s32.totalorder %s136, %s137
      %p149 = scmp.eq.s32.totalorder %s22, 1
      %p150 = por %p148, %p149
      %p152 = scmp.ne.s32.totalorder %s137, %s151
      %p153 = scmp.eq.s32.totalorder %s22, 0
      %p154 = por %p152, %p153
      %s156 = sadd.s32 %s155, 1
      %p159 = scmp.eq.s32.totalorder %s16, 1
      %p160 = scmp.ne.s32.totalorder %s155, %s157
      %p161 = scmp.eq.s32.totalorder %s16, 0
      %p162 = por %p160, %p161
      %p163 = scmp.ne.s32.totalorder %s155, %s157
      %p164 = scmp.eq.s32.totalorder %s21, 1
      %p165 = por %p163, %p164
      %p166 = scmp.ne.s32.totalorder %s157, %s158
      %p167 = scmp.eq.s32.totalorder %s21, 0
      %p168 = por %p166, %p167
      %p169 = scmp.ne.s32.totalorder %s157, %s158
      %p170 = scmp.eq.s32.totalorder %s22, 1
      %p171 = por %p169, %p170
      %p173 = scmp.ne.s32.totalorder %s158, %s172
      %p174 = scmp.eq.s32.totalorder %s22, 0
      %p175 = por %p173, %p174
      %s177 = sadd.s32 %s176, 1
      %p180 = scmp.eq.s32.totalorder %s16, 1
      %p181 = scmp.ne.s32.totalorder %s176, %s178
      %p182 = scmp.eq.s32.totalorder %s16, 0
      %p183 = por %p181, %p182
      %p184 = scmp.ne.s32.totalorder %s176, %s178
      %p185 = scmp.eq.s32.totalorder %s21, 1
      %p186 = por %p184, %p185
      %p187 = scmp.ne.s32.totalorder %s178, %s179
      %p188 = scmp.eq.s32.totalorder %s21, 0
      %p189 = por %p187, %p188
      %p190 = scmp.ne.s32.totalorder %s178, %s179
      %p191 = scmp.eq.s32.totalorder %s22, 1
      %p192 = por %p190, %p191
      %p194 = scmp.ne.s32.totalorder %s179, %s193
      %p195 = scmp.eq.s32.totalorder %s22, 0
      %p196 = por %p194, %p195
      %s197 = ssub.s32 %s23, %s35
      %s198 = ssub.s32 %s24, %s31
      %s199 = sor.u32 %s197, %s198
      %p200 = scmp.eq.s32.totalorder %s199, 0
      %s202 = sadd.s32 %s201, 1
      %s203 = scalar_select %p200, %s201, %s202
      %p206 = pneg %p200
      %p207 = scmp.eq.s32.totalorder %s16, 1
      %p208 = por %p206, %p207
      %p209 = scmp.ne.s32.totalorder %s201, %s204
      %p210 = scmp.eq.s32.totalorder %s16, 0
      %p211 = por %p209, %p210
      %p212 = scmp.ne.s32.totalorder %s201, %s204
      %p213 = scmp.eq.s32.totalorder %s21, 1
      %p214 = por %p212, %p213
      %p215 = scmp.ne.s32.totalorder %s204, %s205
      %p216 = scmp.eq.s32.totalorder %s21, 0
      %p217 = por %p215, %p216
      %p218 = scmp.ne.s32.totalorder %s204, %s205
      %p219 = scmp.eq.s32.totalorder %s22, 1
      %p220 = por %p218, %p219
      %p222 = scmp.ne.s32.totalorder %s205, %s221
      %p223 = scmp.eq.s32.totalorder %s22, 0
      %p224 = por %p222, %p223
      %p225 = scmp.le.s32.totalorder 1, %s16
      %p226 = scmp.lt.s32.totalorder %s16, 3
      %p227 = pnand %p225, %p226
      %p228 = pneg %p227
      // Predicated region
      $region9: #{tpu_custom_call.1} parent=5 // pred_check
        _
      $region10: #{tpu_custom_call.1} parent=5 // pred_check_branch
        %230 = sbr.rel (%p227) target = $region12
      $region11: #{tpu_custom_call.1} parent=5 // pred_region
        %s231 = ssub.s32 %s16, 1
        // Predicated region
        $region13: #{tpu_custom_call.1} parent=11 // pred_check
          %p232 = pneg %p105
        $region14: #{tpu_custom_call.1} parent=11 // pred_check_branch
          %234 = sbr.rel (%p232) target = $region16
        $region15: #{tpu_custom_call.1} parent=11 // pred_region
          _
        $region16: #{tpu_custom_call.1} parent=11 // pred_fallthru
          _
        // Predicated region
        $region17: #{tpu_custom_call.1} parent=11 // pred_check
          %p235 = pneg %p126
        $region18: #{tpu_custom_call.1} parent=11 // pred_check_branch
          %237 = sbr.rel (%p235) target = $region20
        $region19: #{tpu_custom_call.1} parent=11 // pred_region
          _
        $region20: #{tpu_custom_call.1} parent=11 // pred_fallthru
          _
        // Predicated region
        $region21: #{tpu_custom_call.1} parent=11 // pred_check
          %p238 = pneg %p147
        $region22: #{tpu_custom_call.1} parent=11 // pred_check_branch
          %240 = sbr.rel (%p238) target = $region24
        $region23: #{tpu_custom_call.1} parent=11 // pred_region
          _
        $region24: #{tpu_custom_call.1} parent=11 // pred_fallthru
          _
        // Predicated region
        $region25: #{tpu_custom_call.1} parent=11 // pred_check
          %p241 = pneg %p168
        $region26: #{tpu_custom_call.1} parent=11 // pred_check_branch
          %243 = sbr.rel (%p241) target = $region28
        $region27: #{tpu_custom_call.1} parent=11 // pred_region
          _
        $region28: #{tpu_custom_call.1} parent=11 // pred_fallthru
          _
        // Predicated region
        $region29: #{tpu_custom_call.1} parent=11 // pred_check
          %p244 = pneg %p189
        $region30: #{tpu_custom_call.1} parent=11 // pred_check_branch
          %246 = sbr.rel (%p244) target = $region32
        $region31: #{tpu_custom_call.1} parent=11 // pred_region
          _
        $region32: #{tpu_custom_call.1} parent=11 // pred_fallthru
          _
      $region12: #{tpu_custom_call.1} parent=5 // pred_fallthru
        _
      %p247 = scmp.lt.s32.totalorder %s16, 2
      // Predicated region
      $region33: #{tpu_custom_call.1} parent=5 // pred_check
        %p248 = pneg %p247
      $region34: #{tpu_custom_call.1} parent=5 // pred_check_branch
        %250 = sbr.rel (%p248) target = $region36
      $region35: #{tpu_custom_call.1} parent=5 // pred_region
        // Predicated region
        $region37: #{tpu_custom_call.1} parent=35 // pred_check
          %p251 = pneg %p50
        $region38: #{tpu_custom_call.1} parent=35 // pred_check_branch
          %253 = sbr.rel (%p251) target = $region40
        $region39: #{tpu_custom_call.1} parent=35 // pred_region
          %s254 = smul.u32 2, %s23
          %s255 = smul.u32 2, %s24
          %p256 = scmp.lt.s32.totalorder %s254, 3
          %s257 = scalar_select %p256, %s254, 3
          %p258 = scmp.lt.s32.totalorder %s255, 1
          %s259 = scalar_select %p258, %s255, 1
          %s260 = smul.addr %s257, 2
          %s261 = sadd.s32 %s259, %s260
          %s262 = smul.addr %s261, 4
          %s263 = scalar_lea.vmem %s0, %s262
          %s264 = smul.u32 2, %s23
          %s265 = smul.u32 2, %s24
        $region40: #{tpu_custom_call.1} parent=35 // pred_fallthru
          _
        // Predicated region
        $region41: #{tpu_custom_call.1} parent=35 // pred_check
          %p266 = pneg %p78
        $region42: #{tpu_custom_call.1} parent=35 // pred_check_branch
          %268 = sbr.rel (%p266) target = $region44
        $region43: #{tpu_custom_call.1} parent=35 // pred_region
          %s269 = smul.u32 2, %s23
          %s270 = smul.u32 2, %s24
          %p271 = scmp.lt.s32.totalorder %s269, 3
          %s272 = scalar_select %p271, %s269, 3
          %p273 = scmp.lt.s32.totalorder %s270, 1
          %s274 = scalar_select %p273, %s270, 1
          %s275 = smul.addr %s272, 2
          %s276 = sadd.s32 %s274, %s275
          %s277 = scalar_lea.vmem %s1, %s276
          %s278 = smul.u32 2, %s23
          %s279 = smul.u32 2, %s24
        $region44: #{tpu_custom_call.1} parent=35 // pred_fallthru
          _
      $region36: #{tpu_custom_call.1} parent=5 // pred_fallthru
        _
      %p280 = scmp.le.s32.totalorder 1, %s16
      %p281 = scmp.lt.s32.totalorder %s16, 3
      %p282 = pnand %p280, %p281
      %p283 = pneg %p282
      // Predicated region
      $region45: #{tpu_custom_call.1} parent=5 // pred_check
        _
      $region46: #{tpu_custom_call.1} parent=5 // pred_check_branch
        %285 = sbr.rel (%p282) target = $region48
      $region47: #{tpu_custom_call.1} parent=5 // pred_region
        %s286 = ssub.s32 %s16, 1
        %s287 = smul.u32 2, %s25
        %s288 = smul.u32 2, %s26
        %p289 = scmp.lt.s32.totalorder %s287, 3
        %s290 = scalar_select %p289, %s287, 3
        %p291 = scmp.lt.s32.totalorder %s288, 1
        %s292 = scalar_select %p291, %s288, 1
        %s293 = smul.addr %s290, 2
        %s294 = sadd.s32 %s292, %s293
        %s295 = smul.addr %s294, 4
        %s296 = scalar_lea.vmem %s0, %s295
        %p297 = pneg %p56
        %p298 = pneg %p53
        %s299 = smul.u32 2, %s25
        %s300 = smul.u32 2, %s26
        %p301 = scmp.lt.s32.totalorder %s299, 3
        %s302 = scalar_select %p301, %s299, 3
        %p303 = scmp.lt.s32.totalorder %s300, 1
        %s304 = scalar_select %p303, %s300, 1
        %s305 = smul.addr %s302, 2
        %s306 = sadd.s32 %s304, %s305
        %s307 = scalar_lea.vmem %s1, %s306
        %p308 = pneg %p84
        %p309 = pneg %p81
        %p310 = pneg %p105
        %p311 = pneg %p102
        %p312 = pneg %p126
        %p313 = pneg %p123
        %p314 = pneg %p147
        %p315 = pneg %p144
        %p316 = pneg %p168
        %p317 = pneg %p165
        %p318 = pneg %p189
        %p319 = pneg %p186
        %p320 = pneg %p217
        %p321 = pneg %p214
        %s322 = sand.u32 %s204, 1
        %s323 = scalar_lea.sflag [#allocation3], %s322
        %s324 = sand.u32 %s204, 1
        %s325 = smul.addr %s324, 16
        %s326 = scalar_lea.vmem [#allocation2], %s325
        %s327 = smul.u32 2, %s25
        %s328 = smul.u32 2, %s26
        %p329 = scmp.lt.s32.totalorder %s327, 3
        %s330 = scalar_select %p329, %s327, 3
        %p331 = scmp.lt.s32.totalorder %s328, 1
        %s332 = scalar_select %p331, %s328, 1
        %s333 = smul.addr %s330, 2
        %s334 = sadd.s32 %s332, %s333
        %s335 = smul.addr %s334, 4
        %s336 = scalar_lea.vmem %s0, %s335
        %s337 = smul.u32 2, %s25
        %s338 = smul.u32 2, %s26
        %s339 = smul.u32 2, %s25
        %s340 = smul.u32 2, %s26
        %p341 = scmp.lt.s32.totalorder %s339, 3
        %s342 = scalar_select %p341, %s339, 3
        %p343 = scmp.lt.s32.totalorder %s340, 1
        %s344 = scalar_select %p343, %s340, 1
        %s345 = smul.addr %s342, 2
        %s346 = sadd.s32 %s344, %s345
        %s347 = scalar_lea.vmem %s1, %s346
        %s348 = smul.u32 2, %s25
        %s349 = smul.u32 2, %s26
        %s350 = smul.u32 2, %s25
        %s351 = smul.u32 2, %s26
        %v352 = vld [vmem:[%s5] sm:$0xf]
        %v353 = vld [vmem:[%s6] sm:$0xf]
        %v354 = vld [vmem:[%s3] sm:$0xff]
        %v355 = vld [vmem:[%s3 + $0x8] sm:$0xff]
        %v356 = vld [vmem:[%s3 + $0x10] sm:$0xff]
        %v357 = vld [vmem:[%s3 + $0x18] sm:$0xff]
        %v358 = vld [vmem:[%s4] sm:$0xff]
        %v359 = vld [vmem:[%s4 + $0x8] sm:$0xff]
        %v360 = vld [vmem:[%s4 + $0x10] sm:$0xff]
        %v361 = vld [vmem:[%s4 + $0x18] sm:$0xff]
        %v362 = vld [vmem:[%s347] sm:$0x3]
        %364 = vset.pattern.permute.xlu0 0
        %365 = vperm.xlu0 %364, %v354
        %v366 = vpop.permute.xlu0 %365
        %369 = vset.pattern.permute.xlu0 0
        %370 = vperm.xlu0 %369, %v355
        %v371 = vpop.permute.xlu0 %370
        %374 = vset.pattern.permute.xlu0 0
        %375 = vperm.xlu0 %374, %v356
        %v376 = vpop.permute.xlu0 %375
        %379 = vset.pattern.permute.xlu0 0
        %380 = vperm.xlu0 %379, %v357
        %v381 = vpop.permute.xlu0 %380
        %v384 = vlaneseq
        %v385 = vshrl.u32 %v384, 7
        %v386 = vsub.s32 0, %v385
        %v387 = vrot.slane %v362, %v386
        %v388 = vlaneseq
        %v389 = vshrl.u32 %v388, 7
        %v390 = vsub.s32 1, %v389
        %v391 = vrot.slane %v362, %v390
        %v394 = vmul.f32 %v366, %v387
        %v395 = vmul.f32 %v366, %v391
        %v396 = vmul.f32 %v371, %v387
        %v397 = vmul.f32 %v371, %v391
        %v398 = vmul.f32 %v376, %v387
        %v399 = vmul.f32 %v376, %v391
        %v400 = vmul.f32 %v381, %v387
        %v401 = vmul.f32 %v381, %v391
        %403 = vset.pattern.permute.xlu0 0
        %404 = vperm.xlu0 %403, %v358
        %v405 = vpop.permute.xlu0 %404
        %408 = vset.pattern.permute.xlu0 0
        %409 = vperm.xlu0 %408, %v359
        %v410 = vpop.permute.xlu0 %409
        %413 = vset.pattern.permute.xlu0 0
        %414 = vperm.xlu0 %413, %v360
        %v415 = vpop.permute.xlu0 %414
        %418 = vset.pattern.permute.xlu0 0
        %419 = vperm.xlu0 %418, %v361
        %v420 = vpop.permute.xlu0 %419
        %v422 = vadd.f32 %v394, %v405
        %v423 = vadd.f32 %v395, %v405
        %v424 = vadd.f32 %v396, %v410
        %v425 = vadd.f32 %v397, %v410
        %v426 = vadd.f32 %v398, %v415
        %v427 = vadd.f32 %v399, %v415
        %v428 = vadd.f32 %v400, %v420
        %v429 = vadd.f32 %v401, %v420
        %v430 = vand.u32 2147483647, %v422
        %vm431 = vcmp.le.f32.partialorder %v430, 0.7853982
        %vm432 = vcmp.lt.s32.totalorder %v422, 0
        %v433 = vand.u32 %v422, 2139095040
        %v434 = vshrl.u32 %v433, 23
        %v435 = vsub.s32 %v434, 127
        %v436 = vand.u32 2147483647, %v422
        %v437 = vand.u32 %v436, 8388607
        %v438 = vor.u32 %v437, 8388608
        %v439 = vsub.s32 0, %v438
        %v440 = vadd.s32 %v435, 1
        %vm441 = vcmp.gt.s32.totalorder %v440, 0
        %v442 = vsel %vm441, %v440, 0
        %v443 = vshrl.u32 %v442, 5
        %v444 = vand.u32 %v442, 31
        %v445 = vsub.s32 32, %v444
        %v446 = vshrl.u32 683565275, %v445
        %v447 = vshll.u32 683565275, %v444
        %v448 = vshrl.u32 2475754826, %v445
        %v449 = vor.u32 %v447, %v448
        %v450 = vshll.u32 2475754826, %v444
        %v451 = vshrl.u32 2131351028, %v445
        %v452 = vor.u32 %v450, %v451
        %v453 = vshll.u32 2131351028, %v444
        %v454 = vshrl.u32 2102212464, %v445
        %v455 = vor.u32 %v453, %v454
        %v456 = vshll.u32 2102212464, %v444
        %v457 = vshrl.u32 920167782, %v445
        %v458 = vor.u32 %v456, %v457
        %v459 = vshll.u32 920167782, %v444
        %v460 = vshrl.u32 1326507024, %v445
        %v461 = vor.u32 %v459, %v460
        %vm462 = vcmp.lt.s32.totalorder %v443, 1
        %vm463 = vcmp.lt.s32.totalorder %v443, 2
        %vm464 = vcmp.lt.s32.totalorder %v443, 3
        %vm465 = vcmp.lt.s32.totalorder %v443, 4
        %v466 = vsel %vm462, %v446, %v449
        %v467 = vsel %vm465, %v455, 2102212464
        %v468 = vsel %vm464, %v452, %v467
        %v469 = vsel %vm463, %v466, %v468
        %v470 = vsel %vm462, %v449, %v452
        %v471 = vsel %vm465, %v458, 920167782
        %v472 = vsel %vm464, %v455, %v471
        %v473 = vsel %vm463, %v470, %v472
        %v474 = vsel %vm462, %v452, %v455
        %v475 = vsel %vm465, %v461, 1326507024
        %v476 = vsel %vm464, %v458, %v475
        %v477 = vsel %vm463, %v474, %v476
        %v478 = vshll.u32 %v438, 8
        %v479 = vmul.u32.u64.compose %v478, %v477
        %v480 = vextract.low.u32 %v479
        %v481 = vextract.high.u32 %v479
        %v482 = vmul.u32.u64.compose %v478, %v473
        %v483 = vextract.low.u32 %v482
        %v484 = vextract.high.u32 %v482
        %v485 = vmul.u32 %v478, %v469
        %v486 = vadd.s32 %v481, %v483
        %vm487 = vc.u32 %v481, %v483
        %v488 = vadd.s32 %v484, 1
        %v489 = vsel %vm487, %v488, %v484
        %v490 = vadd.s32 %v485, %v489
        %v491 = vadd.s32 %v490, 536870912
        %v492 = vshrl.u32 %v491, 30
        %v493 = vshll.u32 %v492, 30
        %v494 = vsub.s32 %v490, %v493
        %vm495 = vcmp.lt.s32.totalorder %v494, 0
        %v496 = vsub.s32 0, %v494
        %v497 = vsel %vm495, %v496, %v494
        %v498 = vclz %v497
        %v499 = vsub.s32 %v498, 2
        %vm500 = vcmp.gt.s32.totalorder 0, %v499
        %v501 = vsel %vm500, 0, %v499
        %v502 = vsub.s32 32, %v501
        %v503 = vshll.u32 %v494, %v501
        %v504 = vshrl.u32 %v486, %v502
        %v505 = vor.u32 %v503, %v504
        %v506 = vsub.s32 4294967266, %v501
        %v507 = vadd.s32 %v506, 127
        %v508 = vshll.u32 %v507, 23
        %v509 = vor.u32 4788187, %v508
        %v510 = vand.u32 2147483647, %v509
        %v512 = vcvt.s32.f32 %v505
        %v513 = vmul.f32 %v512, %v510
        %v514 = vxor.u32 %v513, 2147483648
        %v515 = vsel %vm432, %v514, %v513
        %v516 = vsub.s32 4, %v492
        %v517 = vsel %vm432, %v516, %v492
        %v518 = vsel %vm431, %v422, %v515
        %v519 = vsel %vm431, 0, %v517
        %v520 = vcosq.f32.pop %v518
        %v521 = vsinq.f32.pop %v518
        %vm522 = vweird.f32 %v422
        %v523 = vadd.s32 %v519, 3
        %v524 = vand.u32 %v523, 3
        %vm525 = vcmp.lt.s32.totalorder %v524, 2
        %vm526 = vcmp.eq.s32.totalorder %v524, 0
        %v527 = vxor.u32 %v521, 2147483648
        %v528 = vsel %vm526, %v520, %v527
        %vm529 = vcmp.eq.s32.totalorder %v524, 2
        %v530 = vxor.u32 %v520, 2147483648
        %v531 = vsel %vm529, %v530, %v521
        %v532 = vsel %vm525, %v528, %v531
        %v533 = vsel %vm522, nan, %v532
        %v534 = vand.u32 2147483647, %v423
        %vm535 = vcmp.le.f32.partialorder %v534, 0.7853982
        %vm536 = vcmp.lt.s32.totalorder %v423, 0
        %v537 = vand.u32 %v423, 2139095040
        %v538 = vshrl.u32 %v537, 23
        %v539 = vsub.s32 %v538, 127
        %v540 = vand.u32 2147483647, %v423
        %v541 = vand.u32 %v540, 8388607
        %v542 = vor.u32 %v541, 8388608
        %v543 = vsub.s32 0, %v542
        %v544 = vadd.s32 %v539, 1
        %vm545 = vcmp.gt.s32.totalorder %v544, 0
        %v546 = vsel %vm545, %v544, 0
        %v547 = vshrl.u32 %v546, 5
        %v548 = vand.u32 %v546, 31
        %v549 = vsub.s32 32, %v548
        %v550 = vshrl.u32 683565275, %v549
        %v551 = vshll.u32 683565275, %v548
        %v552 = vshrl.u32 2475754826, %v549
        %v553 = vor.u32 %v551, %v552
        %v554 = vshll.u32 2475754826, %v548
        %v555 = vshrl.u32 2131351028, %v549
        %v556 = vor.u32 %v554, %v555
        %v557 = vshll.u32 2131351028, %v548
        %v558 = vshrl.u32 2102212464, %v549
        %v559 = vor.u32 %v557, %v558
        %v560 = vshll.u32 2102212464, %v548
        %v561 = vshrl.u32 920167782, %v549
        %v562 = vor.u32 %v560, %v561
        %v563 = vshll.u32 920167782, %v548
        %v564 = vshrl.u32 1326507024, %v549
        %v565 = vor.u32 %v563, %v564
        %vm566 = vcmp.lt.s32.totalorder %v547, 1
        %vm567 = vcmp.lt.s32.totalorder %v547, 2
        %vm568 = vcmp.lt.s32.totalorder %v547, 3
        %vm569 = vcmp.lt.s32.totalorder %v547, 4
        %v570 = vsel %vm566, %v550, %v553
        %v571 = vsel %vm569, %v559, 2102212464
        %v572 = vsel %vm568, %v556, %v571
        %v573 = vsel %vm567, %v570, %v572
        %v574 = vsel %vm566, %v553, %v556
        %v575 = vsel %vm569, %v562, 920167782
        %v576 = vsel %vm568, %v559, %v575
        %v577 = vsel %vm567, %v574, %v576
        %v578 = vsel %vm566, %v556, %v559
        %v579 = vsel %vm569, %v565, 1326507024
        %v580 = vsel %vm568, %v562, %v579
        %v581 = vsel %vm567, %v578, %v580
        %v582 = vshll.u32 %v542, 8
        %v583 = vmul.u32.u64.compose %v582, %v581
        %v584 = vextract.low.u32 %v583
        %v585 = vextract.high.u32 %v583
        %v586 = vmul.u32.u64.compose %v582, %v577
        %v587 = vextract.low.u32 %v586
        %v588 = vextract.high.u32 %v586
        %v589 = vmul.u32 %v582, %v573
        %v590 = vadd.s32 %v585, %v587
        %vm591 = vc.u32 %v585, %v587
        %v592 = vadd.s32 %v588, 1
        %v593 = vsel %vm591, %v592, %v588
        %v594 = vadd.s32 %v589, %v593
        %v595 = vadd.s32 %v594, 536870912
        %v596 = vshrl.u32 %v595, 30
        %v597 = vshll.u32 %v596, 30
        %v598 = vsub.s32 %v594, %v597
        %vm599 = vcmp.lt.s32.totalorder %v598, 0
        %v600 = vsub.s32 0, %v598
        %v601 = vsel %vm599, %v600, %v598
        %v602 = vclz %v601
        %v603 = vsub.s32 %v602, 2
        %vm604 = vcmp.gt.s32.totalorder 0, %v603
        %v605 = vsel %vm604, 0, %v603
        %v606 = vsub.s32 32, %v605
        %v607 = vshll.u32 %v598, %v605
        %v608 = vshrl.u32 %v590, %v606
        %v609 = vor.u32 %v607, %v608
        %v610 = vsub.s32 4294967266, %v605
        %v611 = vadd.s32 %v610, 127
        %v612 = vshll.u32 %v611, 23
        %v613 = vor.u32 4788187, %v612
        %v614 = vand.u32 2147483647, %v613
        %v616 = vcvt.s32.f32 %v609
        %v617 = vmul.f32 %v616, %v614
        %v618 = vxor.u32 %v617, 2147483648
        %v619 = vsel %vm536, %v618, %v617
        %v620 = vsub.s32 4, %v596
        %v621 = vsel %vm536, %v620, %v596
        %v622 = vsel %vm535, %v423, %v619
        %v623 = vsel %vm535, 0, %v621
        %v624 = vcosq.f32.pop %v622
        %v625 = vsinq.f32.pop %v622
        %vm626 = vweird.f32 %v423
        %v627 = vadd.s32 %v623, 3
        %v628 = vand.u32 %v627, 3
        %vm629 = vcmp.lt.s32.totalorder %v628, 2
        %vm630 = vcmp.eq.s32.totalorder %v628, 0
        %v631 = vxor.u32 %v625, 2147483648
        %v632 = vsel %vm630, %v624, %v631
        %vm633 = vcmp.eq.s32.totalorder %v628, 2
        %v634 = vxor.u32 %v624, 2147483648
        %v635 = vsel %vm633, %v634, %v625
        %v636 = vsel %vm629, %v632, %v635
        %v637 = vsel %vm626, nan, %v636
        %v638 = vand.u32 2147483647, %v424
        %vm639 = vcmp.le.f32.partialorder %v638, 0.7853982
        %vm640 = vcmp.lt.s32.totalorder %v424, 0
        %v641 = vand.u32 %v424, 2139095040
        %v642 = vshrl.u32 %v641, 23
        %v643 = vsub.s32 %v642, 127
        %v644 = vand.u32 2147483647, %v424
        %v645 = vand.u32 %v644, 8388607
        %v646 = vor.u32 %v645, 8388608
        %v647 = vsub.s32 0, %v646
        %v648 = vadd.s32 %v643, 1
        %vm649 = vcmp.gt.s32.totalorder %v648, 0
        %v650 = vsel %vm649, %v648, 0
        %v651 = vshrl.u32 %v650, 5
        %v652 = vand.u32 %v650, 31
        %v653 = vsub.s32 32, %v652
        %v654 = vshrl.u32 683565275, %v653
        %v655 = vshll.u32 683565275, %v652
        %v656 = vshrl.u32 2475754826, %v653
        %v657 = vor.u32 %v655, %v656
        %v658 = vshll.u32 2475754826, %v652
        %v659 = vshrl.u32 2131351028, %v653
        %v660 = vor.u32 %v658, %v659
        %v661 = vshll.u32 2131351028, %v652
        %v662 = vshrl.u32 2102212464, %v653
        %v663 = vor.u32 %v661, %v662
        %v664 = vshll.u32 2102212464, %v652
        %v665 = vshrl.u32 920167782, %v653
        %v666 = vor.u32 %v664, %v665
        %v667 = vshll.u32 920167782, %v652
        %v668 = vshrl.u32 1326507024, %v653
        %v669 = vor.u32 %v667, %v668
        %vm670 = vcmp.lt.s32.totalorder %v651, 1
        %vm671 = vcmp.lt.s32.totalorder %v651, 2
        %vm672 = vcmp.lt.s32.totalorder %v651, 3
        %vm673 = vcmp.lt.s32.totalorder %v651, 4
        %v674 = vsel %vm670, %v654, %v657
        %v675 = vsel %vm673, %v663, 2102212464
        %v676 = vsel %vm672, %v660, %v675
        %v677 = vsel %vm671, %v674, %v676
        %v678 = vsel %vm670, %v657, %v660
        %v679 = vsel %vm673, %v666, 920167782
        %v680 = vsel %vm672, %v663, %v679
        %v681 = vsel %vm671, %v678, %v680
        %v682 = vsel %vm670, %v660, %v663
        %v683 = vsel %vm673, %v669, 1326507024
        %v684 = vsel %vm672, %v666, %v683
        %v685 = vsel %vm671, %v682, %v684
        %v686 = vshll.u32 %v646, 8
        %v687 = vmul.u32.u64.compose %v686, %v685
        %v688 = vextract.low.u32 %v687
        %v689 = vextract.high.u32 %v687
        %v690 = vmul.u32.u64.compose %v686, %v681
        %v691 = vextract.low.u32 %v690
        %v692 = vextract.high.u32 %v690
        %v693 = vmul.u32 %v686, %v677
        %v694 = vadd.s32 %v689, %v691
        %vm695 = vc.u32 %v689, %v691
        %v696 = vadd.s32 %v692, 1
        %v697 = vsel %vm695, %v696, %v692
        %v698 = vadd.s32 %v693, %v697
        %v699 = vadd.s32 %v698, 536870912
        %v700 = vshrl.u32 %v699, 30
        %v701 = vshll.u32 %v700, 30
        %v702 = vsub.s32 %v698, %v701
        %vm703 = vcmp.lt.s32.totalorder %v702, 0
        %v704 = vsub.s32 0, %v702
        %v705 = vsel %vm703, %v704, %v702
        %v706 = vclz %v705
        %v707 = vsub.s32 %v706, 2
        %vm708 = vcmp.gt.s32.totalorder 0, %v707
        %v709 = vsel %vm708, 0, %v707
        %v710 = vsub.s32 32, %v709
        %v711 = vshll.u32 %v702, %v709
        %v712 = vshrl.u32 %v694, %v710
        %v713 = vor.u32 %v711, %v712
        %v714 = vsub.s32 4294967266, %v709
        %v715 = vadd.s32 %v714, 127
        %v716 = vshll.u32 %v715, 23
        %v717 = vor.u32 4788187, %v716
        %v718 = vand.u32 2147483647, %v717
        %v720 = vcvt.s32.f32 %v713
        %v721 = vmul.f32 %v720, %v718
        %v722 = vxor.u32 %v721, 2147483648
        %v723 = vsel %vm640, %v722, %v721
        %v724 = vsub.s32 4, %v700
        %v725 = vsel %vm640, %v724, %v700
        %v726 = vsel %vm639, %v424, %v723
        %v727 = vsel %vm639, 0, %v725
        %v728 = vcosq.f32.pop %v726
        %v729 = vsinq.f32.pop %v726
        %vm730 = vweird.f32 %v424
        %v731 = vadd.s32 %v727, 3
        %v732 = vand.u32 %v731, 3
        %vm733 = vcmp.lt.s32.totalorder %v732, 2
        %vm734 = vcmp.eq.s32.totalorder %v732, 0
        %v735 = vxor.u32 %v729, 2147483648
        %v736 = vsel %vm734, %v728, %v735
        %vm737 = vcmp.eq.s32.totalorder %v732, 2
        %v738 = vxor.u32 %v728, 2147483648
        %v739 = vsel %vm737, %v738, %v729
        %v740 = vsel %vm733, %v736, %v739
        %v741 = vsel %vm730, nan, %v740
        %v742 = vand.u32 2147483647, %v425
        %vm743 = vcmp.le.f32.partialorder %v742, 0.7853982
        %vm744 = vcmp.lt.s32.totalorder %v425, 0
        %v745 = vand.u32 %v425, 2139095040
        %v746 = vshrl.u32 %v745, 23
        %v747 = vsub.s32 %v746, 127
        %v748 = vand.u32 2147483647, %v425
        %v749 = vand.u32 %v748, 8388607
        %v750 = vor.u32 %v749, 8388608
        %v751 = vsub.s32 0, %v750
        %v752 = vadd.s32 %v747, 1
        %vm753 = vcmp.gt.s32.totalorder %v752, 0
        %v754 = vsel %vm753, %v752, 0
        %v755 = vshrl.u32 %v754, 5
        %v756 = vand.u32 %v754, 31
        %v757 = vsub.s32 32, %v756
        %v758 = vshrl.u32 683565275, %v757
        %v759 = vshll.u32 683565275, %v756
        %v760 = vshrl.u32 2475754826, %v757
        %v761 = vor.u32 %v759, %v760
        %v762 = vshll.u32 2475754826, %v756
        %v763 = vshrl.u32 2131351028, %v757
        %v764 = vor.u32 %v762, %v763
        %v765 = vshll.u32 2131351028, %v756
        %v766 = vshrl.u32 2102212464, %v757
        %v767 = vor.u32 %v765, %v766
        %v768 = vshll.u32 2102212464, %v756
        %v769 = vshrl.u32 920167782, %v757
        %v770 = vor.u32 %v768, %v769
        %v771 = vshll.u32 920167782, %v756
        %v772 = vshrl.u32 1326507024, %v757
        %v773 = vor.u32 %v771, %v772
        %vm774 = vcmp.lt.s32.totalorder %v755, 1
        %vm775 = vcmp.lt.s32.totalorder %v755, 2
        %vm776 = vcmp.lt.s32.totalorder %v755, 3
        %vm777 = vcmp.lt.s32.totalorder %v755, 4
        %v778 = vsel %vm774, %v758, %v761
        %v779 = vsel %vm777, %v767, 2102212464
        %v780 = vsel %vm776, %v764, %v779
        %v781 = vsel %vm775, %v778, %v780
        %v782 = vsel %vm774, %v761, %v764
        %v783 = vsel %vm777, %v770, 920167782
        %v784 = vsel %vm776, %v767, %v783
        %v785 = vsel %vm775, %v782, %v784
        %v786 = vsel %vm774, %v764, %v767
        %v787 = vsel %vm777, %v773, 1326507024
        %v788 = vsel %vm776, %v770, %v787
        %v789 = vsel %vm775, %v786, %v788
        %v790 = vshll.u32 %v750, 8
        %v791 = vmul.u32.u64.compose %v790, %v789
        %v792 = vextract.low.u32 %v791
        %v793 = vextract.high.u32 %v791
        %v794 = vmul.u32.u64.compose %v790, %v785
        %v795 = vextract.low.u32 %v794
        %v796 = vextract.high.u32 %v794
        %v797 = vmul.u32 %v790, %v781
        %v798 = vadd.s32 %v793, %v795
        %vm799 = vc.u32 %v793, %v795
        %v800 = vadd.s32 %v796, 1
        %v801 = vsel %vm799, %v800, %v796
        %v802 = vadd.s32 %v797, %v801
        %v803 = vadd.s32 %v802, 536870912
        %v804 = vshrl.u32 %v803, 30
        %v805 = vshll.u32 %v804, 30
        %v806 = vsub.s32 %v802, %v805
        %vm807 = vcmp.lt.s32.totalorder %v806, 0
        %v808 = vsub.s32 0, %v806
        %v809 = vsel %vm807, %v808, %v806
        %v810 = vclz %v809
        %v811 = vsub.s32 %v810, 2
        %vm812 = vcmp.gt.s32.totalorder 0, %v811
        %v813 = vsel %vm812, 0, %v811
        %v814 = vsub.s32 32, %v813
        %v815 = vshll.u32 %v806, %v813
        %v816 = vshrl.u32 %v798, %v814
        %v817 = vor.u32 %v815, %v816
        %v818 = vsub.s32 4294967266, %v813
        %v819 = vadd.s32 %v818, 127
        %v820 = vshll.u32 %v819, 23
        %v821 = vor.u32 4788187, %v820
        %v822 = vand.u32 2147483647, %v821
        %v824 = vcvt.s32.f32 %v817
        %v825 = vmul.f32 %v824, %v822
        %v826 = vxor.u32 %v825, 2147483648
        %v827 = vsel %vm744, %v826, %v825
        %v828 = vsub.s32 4, %v804
        %v829 = vsel %vm744, %v828, %v804
        %v830 = vsel %vm743, %v425, %v827
        %v831 = vsel %vm743, 0, %v829
        %v832 = vcosq.f32.pop %v830
        %v833 = vsinq.f32.pop %v830
        %vm834 = vweird.f32 %v425
        %v835 = vadd.s32 %v831, 3
        %v836 = vand.u32 %v835, 3
        %vm837 = vcmp.lt.s32.totalorder %v836, 2
        %vm838 = vcmp.eq.s32.totalorder %v836, 0
        %v839 = vxor.u32 %v833, 2147483648
        %v840 = vsel %vm838, %v832, %v839
        %vm841 = vcmp.eq.s32.totalorder %v836, 2
        %v842 = vxor.u32 %v832, 2147483648
        %v843 = vsel %vm841, %v842, %v833
        %v844 = vsel %vm837, %v840, %v843
        %v845 = vsel %vm834, nan, %v844
        %v846 = vand.u32 2147483647, %v426
        %vm847 = vcmp.le.f32.partialorder %v846, 0.7853982
        %vm848 = vcmp.lt.s32.totalorder %v426, 0
        %v849 = vand.u32 %v426, 2139095040
        %v850 = vshrl.u32 %v849, 23
        %v851 = vsub.s32 %v850, 127
        %v852 = vand.u32 2147483647, %v426
        %v853 = vand.u32 %v852, 8388607
        %v854 = vor.u32 %v853, 8388608
        %v855 = vsub.s32 0, %v854
        %v856 = vadd.s32 %v851, 1
        %vm857 = vcmp.gt.s32.totalorder %v856, 0
        %v858 = vsel %vm857, %v856, 0
        %v859 = vshrl.u32 %v858, 5
        %v860 = vand.u32 %v858, 31
        %v861 = vsub.s32 32, %v860
        %v862 = vshrl.u32 683565275, %v861
        %v863 = vshll.u32 683565275, %v860
        %v864 = vshrl.u32 2475754826, %v861
        %v865 = vor.u32 %v863, %v864
        %v866 = vshll.u32 2475754826, %v860
        %v867 = vshrl.u32 2131351028, %v861
        %v868 = vor.u32 %v866, %v867
        %v869 = vshll.u32 2131351028, %v860
        %v870 = vshrl.u32 2102212464, %v861
        %v871 = vor.u32 %v869, %v870
        %v872 = vshll.u32 2102212464, %v860
        %v873 = vshrl.u32 920167782, %v861
        %v874 = vor.u32 %v872, %v873
        %v875 = vshll.u32 920167782, %v860
        %v876 = vshrl.u32 1326507024, %v861
        %v877 = vor.u32 %v875, %v876
        %vm878 = vcmp.lt.s32.totalorder %v859, 1
        %vm879 = vcmp.lt.s32.totalorder %v859, 2
        %vm880 = vcmp.lt.s32.totalorder %v859, 3
        %vm881 = vcmp.lt.s32.totalorder %v859, 4
        %v882 = vsel %vm878, %v862, %v865
        %v883 = vsel %vm881, %v871, 2102212464
        %v884 = vsel %vm880, %v868, %v883
        %v885 = vsel %vm879, %v882, %v884
        %v886 = vsel %vm878, %v865, %v868
        %v887 = vsel %vm881, %v874, 920167782
        %v888 = vsel %vm880, %v871, %v887
        %v889 = vsel %vm879, %v886, %v888
        %v890 = vsel %vm878, %v868, %v871
        %v891 = vsel %vm881, %v877, 1326507024
        %v892 = vsel %vm880, %v874, %v891
        %v893 = vsel %vm879, %v890, %v892
        %v894 = vshll.u32 %v854, 8
        %v895 = vmul.u32.u64.compose %v894, %v893
        %v896 = vextract.low.u32 %v895
        %v897 = vextract.high.u32 %v895
        %v898 = vmul.u32.u64.compose %v894, %v889
        %v899 = vextract.low.u32 %v898
        %v900 = vextract.high.u32 %v898
        %v901 = vmul.u32 %v894, %v885
        %v902 = vadd.s32 %v897, %v899
        %vm903 = vc.u32 %v897, %v899
        %v904 = vadd.s32 %v900, 1
        %v905 = vsel %vm903, %v904, %v900
        %v906 = vadd.s32 %v901, %v905
        %v907 = vadd.s32 %v906, 536870912
        %v908 = vshrl.u32 %v907, 30
        %v909 = vshll.u32 %v908, 30
        %v910 = vsub.s32 %v906, %v909
        %vm911 = vcmp.lt.s32.totalorder %v910, 0
        %v912 = vsub.s32 0, %v910
        %v913 = vsel %vm911, %v912, %v910
        %v914 = vclz %v913
        %v915 = vsub.s32 %v914, 2
        %vm916 = vcmp.gt.s32.totalorder 0, %v915
        %v917 = vsel %vm916, 0, %v915
        %v918 = vsub.s32 32, %v917
        %v919 = vshll.u32 %v910, %v917
        %v920 = vshrl.u32 %v902, %v918
        %v921 = vor.u32 %v919, %v920
        %v922 = vsub.s32 4294967266, %v917
        %v923 = vadd.s32 %v922, 127
        %v924 = vshll.u32 %v923, 23
        %v925 = vor.u32 4788187, %v924
        %v926 = vand.u32 2147483647, %v925
        %v928 = vcvt.s32.f32 %v921
        %v929 = vmul.f32 %v928, %v926
        %v930 = vxor.u32 %v929, 2147483648
        %v931 = vsel %vm848, %v930, %v929
        %v932 = vsub.s32 4, %v908
        %v933 = vsel %vm848, %v932, %v908
        %v934 = vsel %vm847, %v426, %v931
        %v935 = vsel %vm847, 0, %v933
        %v936 = vcosq.f32.pop %v934
        %v937 = vsinq.f32.pop %v934
        %vm938 = vweird.f32 %v426
        %v939 = vadd.s32 %v935, 3
        %v940 = vand.u32 %v939, 3
        %vm941 = vcmp.lt.s32.totalorder %v940, 2
        %vm942 = vcmp.eq.s32.totalorder %v940, 0
        %v943 = vxor.u32 %v937, 2147483648
        %v944 = vsel %vm942, %v936, %v943
        %vm945 = vcmp.eq.s32.totalorder %v940, 2
        %v946 = vxor.u32 %v936, 2147483648
        %v947 = vsel %vm945, %v946, %v937
        %v948 = vsel %vm941, %v944, %v947
        %v949 = vsel %vm938, nan, %v948
        %v950 = vand.u32 2147483647, %v427
        %vm951 = vcmp.le.f32.partialorder %v950, 0.7853982
        %vm952 = vcmp.lt.s32.totalorder %v427, 0
        %v953 = vand.u32 %v427, 2139095040
        %v954 = vshrl.u32 %v953, 23
        %v955 = vsub.s32 %v954, 127
        %v956 = vand.u32 2147483647, %v427
        %v957 = vand.u32 %v956, 8388607
        %v958 = vor.u32 %v957, 8388608
        %v959 = vsub.s32 0, %v958
        %v960 = vadd.s32 %v955, 1
        %vm961 = vcmp.gt.s32.totalorder %v960, 0
        %v962 = vsel %vm961, %v960, 0
        %v963 = vshrl.u32 %v962, 5
        %v964 = vand.u32 %v962, 31
        %v965 = vsub.s32 32, %v964
        %v966 = vshrl.u32 683565275, %v965
        %v967 = vshll.u32 683565275, %v964
        %v968 = vshrl.u32 2475754826, %v965
        %v969 = vor.u32 %v967, %v968
        %v970 = vshll.u32 2475754826, %v964
        %v971 = vshrl.u32 2131351028, %v965
        %v972 = vor.u32 %v970, %v971
        %v973 = vshll.u32 2131351028, %v964
        %v974 = vshrl.u32 2102212464, %v965
        %v975 = vor.u32 %v973, %v974
        %v976 = vshll.u32 2102212464, %v964
        %v977 = vshrl.u32 920167782, %v965
        %v978 = vor.u32 %v976, %v977
        %v979 = vshll.u32 920167782, %v964
        %v980 = vshrl.u32 1326507024, %v965
        %v981 = vor.u32 %v979, %v980
        %vm982 = vcmp.lt.s32.totalorder %v963, 1
        %vm983 = vcmp.lt.s32.totalorder %v963, 2
        %vm984 = vcmp.lt.s32.totalorder %v963, 3
        %vm985 = vcmp.lt.s32.totalorder %v963, 4
        %v986 = vsel %vm982, %v966, %v969
        %v987 = vsel %vm985, %v975, 2102212464
        %v988 = vsel %vm984, %v972, %v987
        %v989 = vsel %vm983, %v986, %v988
        %v990 = vsel %vm982, %v969, %v972
        %v991 = vsel %vm985, %v978, 920167782
        %v992 = vsel %vm984, %v975, %v991
        %v993 = vsel %vm983, %v990, %v992
        %v994 = vsel %vm982, %v972, %v975
        %v995 = vsel %vm985, %v981, 1326507024
        %v996 = vsel %vm984, %v978, %v995
        %v997 = vsel %vm983, %v994, %v996
        %v998 = vshll.u32 %v958, 8
        %v999 = vmul.u32.u64.compose %v998, %v997
        %v1000 = vextract.low.u32 %v999
        %v1001 = vextract.high.u32 %v999
        %v1002 = vmul.u32.u64.compose %v998, %v993
        %v1003 = vextract.low.u32 %v1002
        %v1004 = vextract.high.u32 %v1002
        %v1005 = vmul.u32 %v998, %v989
        %v1006 = vadd.s32 %v1001, %v1003
        %vm1007 = vc.u32 %v1001, %v1003
        %v1008 = vadd.s32 %v1004, 1
        %v1009 = vsel %vm1007, %v1008, %v1004
        %v1010 = vadd.s32 %v1005, %v1009
        %v1011 = vadd.s32 %v1010, 536870912
        %v1012 = vshrl.u32 %v1011, 30
        %v1013 = vshll.u32 %v1012, 30
        %v1014 = vsub.s32 %v1010, %v1013
        %vm1015 = vcmp.lt.s32.totalorder %v1014, 0
        %v1016 = vsub.s32 0, %v1014
        %v1017 = vsel %vm1015, %v1016, %v1014
        %v1018 = vclz %v1017
        %v1019 = vsub.s32 %v1018, 2
        %vm1020 = vcmp.gt.s32.totalorder 0, %v1019
        %v1021 = vsel %vm1020, 0, %v1019
        %v1022 = vsub.s32 32, %v1021
        %v1023 = vshll.u32 %v1014, %v1021
        %v1024 = vshrl.u32 %v1006, %v1022
        %v1025 = vor.u32 %v1023, %v1024
        %v1026 = vsub.s32 4294967266, %v1021
        %v1027 = vadd.s32 %v1026, 127
        %v1028 = vshll.u32 %v1027, 23
        %v1029 = vor.u32 4788187, %v1028
        %v1030 = vand.u32 2147483647, %v1029
        %v1032 = vcvt.s32.f32 %v1025
        %v1033 = vmul.f32 %v1032, %v1030
        %v1034 = vxor.u32 %v1033, 2147483648
        %v1035 = vsel %vm952, %v1034, %v1033
        %v1036 = vsub.s32 4, %v1012
        %v1037 = vsel %vm952, %v1036, %v1012
        %v1038 = vsel %vm951, %v427, %v1035
        %v1039 = vsel %vm951, 0, %v1037
        %v1040 = vcosq.f32.pop %v1038
        %v1041 = vsinq.f32.pop %v1038
        %vm1042 = vweird.f32 %v427
        %v1043 = vadd.s32 %v1039, 3
        %v1044 = vand.u32 %v1043, 3
        %vm1045 = vcmp.lt.s32.totalorder %v1044, 2
        %vm1046 = vcmp.eq.s32.totalorder %v1044, 0
        %v1047 = vxor.u32 %v1041, 2147483648
        %v1048 = vsel %vm1046, %v1040, %v1047
        %vm1049 = vcmp.eq.s32.totalorder %v1044, 2
        %v1050 = vxor.u32 %v1040, 2147483648
        %v1051 = vsel %vm1049, %v1050, %v1041
        %v1052 = vsel %vm1045, %v1048, %v1051
        %v1053 = vsel %vm1042, nan, %v1052
        %v1054 = vand.u32 2147483647, %v428
        %vm1055 = vcmp.le.f32.partialorder %v1054, 0.7853982
        %vm1056 = vcmp.lt.s32.totalorder %v428, 0
        %v1057 = vand.u32 %v428, 2139095040
        %v1058 = vshrl.u32 %v1057, 23
        %v1059 = vsub.s32 %v1058, 127
        %v1060 = vand.u32 2147483647, %v428
        %v1061 = vand.u32 %v1060, 8388607
        %v1062 = vor.u32 %v1061, 8388608
        %v1063 = vsub.s32 0, %v1062
        %v1064 = vadd.s32 %v1059, 1
        %vm1065 = vcmp.gt.s32.totalorder %v1064, 0
        %v1066 = vsel %vm1065, %v1064, 0
        %v1067 = vshrl.u32 %v1066, 5
        %v1068 = vand.u32 %v1066, 31
        %v1069 = vsub.s32 32, %v1068
        %v1070 = vshrl.u32 683565275, %v1069
        %v1071 = vshll.u32 683565275, %v1068
        %v1072 = vshrl.u32 2475754826, %v1069
        %v1073 = vor.u32 %v1071, %v1072
        %v1074 = vshll.u32 2475754826, %v1068
        %v1075 = vshrl.u32 2131351028, %v1069
        %v1076 = vor.u32 %v1074, %v1075
        %v1077 = vshll.u32 2131351028, %v1068
        %v1078 = vshrl.u32 2102212464, %v1069
        %v1079 = vor.u32 %v1077, %v1078
        %v1080 = vshll.u32 2102212464, %v1068
        %v1081 = vshrl.u32 920167782, %v1069
        %v1082 = vor.u32 %v1080, %v1081
        %v1083 = vshll.u32 920167782, %v1068
        %v1084 = vshrl.u32 1326507024, %v1069
        %v1085 = vor.u32 %v1083, %v1084
        %vm1086 = vcmp.lt.s32.totalorder %v1067, 1
        %vm1087 = vcmp.lt.s32.totalorder %v1067, 2
        %vm1088 = vcmp.lt.s32.totalorder %v1067, 3
        %vm1089 = vcmp.lt.s32.totalorder %v1067, 4
        %v1090 = vsel %vm1086, %v1070, %v1073
        %v1091 = vsel %vm1089, %v1079, 2102212464
        %v1092 = vsel %vm1088, %v1076, %v1091
        %v1093 = vsel %vm1087, %v1090, %v1092
        %v1094 = vsel %vm1086, %v1073, %v1076
        %v1095 = vsel %vm1089, %v1082, 920167782
        %v1096 = vsel %vm1088, %v1079, %v1095
        %v1097 = vsel %vm1087, %v1094, %v1096
        %v1098 = vsel %vm1086, %v1076, %v1079
        %v1099 = vsel %vm1089, %v1085, 1326507024
        %v1100 = vsel %vm1088, %v1082, %v1099
        %v1101 = vsel %vm1087, %v1098, %v1100
        %v1102 = vshll.u32 %v1062, 8
        %v1103 = vmul.u32.u64.compose %v1102, %v1101
        %v1104 = vextract.low.u32 %v1103
        %v1105 = vextract.high.u32 %v1103
        %v1106 = vmul.u32.u64.compose %v1102, %v1097
        %v1107 = vextract.low.u32 %v1106
        %v1108 = vextract.high.u32 %v1106
        %v1109 = vmul.u32 %v1102, %v1093
        %v1110 = vadd.s32 %v1105, %v1107
        %vm1111 = vc.u32 %v1105, %v1107
        %v1112 = vadd.s32 %v1108, 1
        %v1113 = vsel %vm1111, %v1112, %v1108
        %v1114 = vadd.s32 %v1109, %v1113
        %v1115 = vadd.s32 %v1114, 536870912
        %v1116 = vshrl.u32 %v1115, 30
        %v1117 = vshll.u32 %v1116, 30
        %v1118 = vsub.s32 %v1114, %v1117
        %vm1119 = vcmp.lt.s32.totalorder %v1118, 0
        %v1120 = vsub.s32 0, %v1118
        %v1121 = vsel %vm1119, %v1120, %v1118
        %v1122 = vclz %v1121
        %v1123 = vsub.s32 %v1122, 2
        %vm1124 = vcmp.gt.s32.totalorder 0, %v1123
        %v1125 = vsel %vm1124, 0, %v1123
        %v1126 = vsub.s32 32, %v1125
        %v1127 = vshll.u32 %v1118, %v1125
        %v1128 = vshrl.u32 %v1110, %v1126
        %v1129 = vor.u32 %v1127, %v1128
        %v1130 = vsub.s32 4294967266, %v1125
        %v1131 = vadd.s32 %v1130, 127
        %v1132 = vshll.u32 %v1131, 23
        %v1133 = vor.u32 4788187, %v1132
        %v1134 = vand.u32 2147483647, %v1133
        %v1136 = vcvt.s32.f32 %v1129
        %v1137 = vmul.f32 %v1136, %v1134
        %v1138 = vxor.u32 %v1137, 2147483648
        %v1139 = vsel %vm1056, %v1138, %v1137
        %v1140 = vsub.s32 4, %v1116
        %v1141 = vsel %vm1056, %v1140, %v1116
        %v1142 = vsel %vm1055, %v428, %v1139
        %v1143 = vsel %vm1055, 0, %v1141
        %v1144 = vcosq.f32.pop %v1142
        %v1145 = vsinq.f32.pop %v1142
        %vm1146 = vweird.f32 %v428
        %v1147 = vadd.s32 %v1143, 3
        %v1148 = vand.u32 %v1147, 3
        %vm1149 = vcmp.lt.s32.totalorder %v1148, 2
        %vm1150 = vcmp.eq.s32.totalorder %v1148, 0
        %v1151 = vxor.u32 %v1145, 2147483648
        %v1152 = vsel %vm1150, %v1144, %v1151
        %vm1153 = vcmp.eq.s32.totalorder %v1148, 2
        %v1154 = vxor.u32 %v1144, 2147483648
        %v1155 = vsel %vm1153, %v1154, %v1145
        %v1156 = vsel %vm1149, %v1152, %v1155
        %v1157 = vsel %vm1146, nan, %v1156
        %v1158 = vand.u32 2147483647, %v429
        %vm1159 = vcmp.le.f32.partialorder %v1158, 0.7853982
        %vm1160 = vcmp.lt.s32.totalorder %v429, 0
        %v1161 = vand.u32 %v429, 2139095040
        %v1162 = vshrl.u32 %v1161, 23
        %v1163 = vsub.s32 %v1162, 127
        %v1164 = vand.u32 2147483647, %v429
        %v1165 = vand.u32 %v1164, 8388607
        %v1166 = vor.u32 %v1165, 8388608
        %v1167 = vsub.s32 0, %v1166
        %v1168 = vadd.s32 %v1163, 1
        %vm1169 = vcmp.gt.s32.totalorder %v1168, 0
        %v1170 = vsel %vm1169, %v1168, 0
        %v1171 = vshrl.u32 %v1170, 5
        %v1172 = vand.u32 %v1170, 31
        %v1173 = vsub.s32 32, %v1172
        %v1174 = vshrl.u32 683565275, %v1173
        %v1175 = vshll.u32 683565275, %v1172
        %v1176 = vshrl.u32 2475754826, %v1173
        %v1177 = vor.u32 %v1175, %v1176
        %v1178 = vshll.u32 2475754826, %v1172
        %v1179 = vshrl.u32 2131351028, %v1173
        %v1180 = vor.u32 %v1178, %v1179
        %v1181 = vshll.u32 2131351028, %v1172
        %v1182 = vshrl.u32 2102212464, %v1173
        %v1183 = vor.u32 %v1181, %v1182
        %v1184 = vshll.u32 2102212464, %v1172
        %v1185 = vshrl.u32 920167782, %v1173
        %v1186 = vor.u32 %v1184, %v1185
        %v1187 = vshll.u32 920167782, %v1172
        %v1188 = vshrl.u32 1326507024, %v1173
        %v1189 = vor.u32 %v1187, %v1188
        %vm1190 = vcmp.lt.s32.totalorder %v1171, 1
        %vm1191 = vcmp.lt.s32.totalorder %v1171, 2
        %vm1192 = vcmp.lt.s32.totalorder %v1171, 3
        %vm1193 = vcmp.lt.s32.totalorder %v1171, 4
        %v1194 = vsel %vm1190, %v1174, %v1177
        %v1195 = vsel %vm1193, %v1183, 2102212464
        %v1196 = vsel %vm1192, %v1180, %v1195
        %v1197 = vsel %vm1191, %v1194, %v1196
        %v1198 = vsel %vm1190, %v1177, %v1180
        %v1199 = vsel %vm1193, %v1186, 920167782
        %v1200 = vsel %vm1192, %v1183, %v1199
        %v1201 = vsel %vm1191, %v1198, %v1200
        %v1202 = vsel %vm1190, %v1180, %v1183
        %v1203 = vsel %vm1193, %v1189, 1326507024
        %v1204 = vsel %vm1192, %v1186, %v1203
        %v1205 = vsel %vm1191, %v1202, %v1204
        %v1206 = vshll.u32 %v1166, 8
        %v1207 = vmul.u32.u64.compose %v1206, %v1205
        %v1208 = vextract.low.u32 %v1207
        %v1209 = vextract.high.u32 %v1207
        %v1210 = vmul.u32.u64.compose %v1206, %v1201
        %v1211 = vextract.low.u32 %v1210
        %v1212 = vextract.high.u32 %v1210
        %v1213 = vmul.u32 %v1206, %v1197
        %v1214 = vadd.s32 %v1209, %v1211
        %vm1215 = vc.u32 %v1209, %v1211
        %v1216 = vadd.s32 %v1212, 1
        %v1217 = vsel %vm1215, %v1216, %v1212
        %v1218 = vadd.s32 %v1213, %v1217
        %v1219 = vadd.s32 %v1218, 536870912
        %v1220 = vshrl.u32 %v1219, 30
        %v1221 = vshll.u32 %v1220, 30
        %v1222 = vsub.s32 %v1218, %v1221
        %vm1223 = vcmp.lt.s32.totalorder %v1222, 0
        %v1224 = vsub.s32 0, %v1222
        %v1225 = vsel %vm1223, %v1224, %v1222
        %v1226 = vclz %v1225
        %v1227 = vsub.s32 %v1226, 2
        %vm1228 = vcmp.gt.s32.totalorder 0, %v1227
        %v1229 = vsel %vm1228, 0, %v1227
        %v1230 = vsub.s32 32, %v1229
        %v1231 = vshll.u32 %v1222, %v1229
        %v1232 = vshrl.u32 %v1214, %v1230
        %v1233 = vor.u32 %v1231, %v1232
        %v1234 = vsub.s32 4294967266, %v1229
        %v1235 = vadd.s32 %v1234, 127
        %v1236 = vshll.u32 %v1235, 23
        %v1237 = vor.u32 4788187, %v1236
        %v1238 = vand.u32 2147483647, %v1237
        %v1240 = vcvt.s32.f32 %v1233
        %v1241 = vmul.f32 %v1240, %v1238
        %v1242 = vxor.u32 %v1241, 2147483648
        %v1243 = vsel %vm1160, %v1242, %v1241
        %v1244 = vsub.s32 4, %v1220
        %v1245 = vsel %vm1160, %v1244, %v1220
        %v1246 = vsel %vm1159, %v429, %v1243
        %v1247 = vsel %vm1159, 0, %v1245
        %v1248 = vcosq.f32.pop %v1246
        %v1249 = vsinq.f32.pop %v1246
        %vm1250 = vweird.f32 %v429
        %v1251 = vadd.s32 %v1247, 3
        %v1252 = vand.u32 %v1251, 3
        %vm1253 = vcmp.lt.s32.totalorder %v1252, 2
        %vm1254 = vcmp.eq.s32.totalorder %v1252, 0
        %v1255 = vxor.u32 %v1249, 2147483648
        %v1256 = vsel %vm1254, %v1248, %v1255
        %vm1257 = vcmp.eq.s32.totalorder %v1252, 2
        %v1258 = vxor.u32 %v1248, 2147483648
        %v1259 = vsel %vm1257, %v1258, %v1249
        %v1260 = vsel %vm1253, %v1256, %v1259
        %v1261 = vsel %vm1250, nan, %v1260
        %v1262 = vld [vmem:[%s336] sm:$0xff]
        %vm1263 = vcmask 261120
        %v1265 = vsel %vm1263, %v353, 0
        %1267 = vmatprep.subr.mxu0 0.0
        %1268 = vmatpush1.msra.mxu0 0.0
        %1269 = vmatprep.subr.mxu0 0.0
        %1270 = vmatpush1.msra.mxu0 0.0
        %1271 = vmatprep.subr.mxu0 0.0
        %1272 = vmatpush1.msra.mxu0 0.0
        %1273 = vmatprep.subr.mxu0 0.0
        %1274 = vmatpush1.msra.mxu0 0.0
        %1275 = vmatprep.subr.mxu0 0.0
        %1276 = vmatpush1.msra.mxu0 0.0
        %1277 = vmatprep.subr.mxu0 0.0
        %1278 = vmatpush1.msra.mxu0 0.0
        %1279 = vmatprep.subr.mxu0 0.0
        %1280 = vmatpush1.msra.mxu0 0.0
        %1281 = vmatprep.subr.mxu0 0.0
        %1282 = vmatpush1.msra.mxu0 0.0
        %1283 = vmatprep.subr.mxu0 0.0
        %1284 = vmatpush1.msra.mxu0 0.0
        %1285 = vmatprep.subr.mxu0 0.0
        %1286 = vmatpush1.msra.mxu0 0.0
        %1287 = vmatprep.subr.mxu0 0.0
        %1288 = vmatpush1.msra.mxu0 0.0
        %1289 = vmatprep.subr.mxu0 0.0
        %1290 = vmatpush1.msra.mxu0 0.0
        %1291 = vmatprep.subr.mxu0 %v1261
        %1292 = vmatpush1.msra.mxu0 %v1157
        %1293 = vmatprep.subr.mxu0 %v1053
        %1294 = vmatpush1.msra.mxu0 %v949
        %1295 = vmatprep.subr.mxu0 %v845
        %1296 = vmatpush1.msra.mxu0 %v741
        %1297 = vmatprep.subr.mxu0 %v637
        %1298 = vmatpush1.msra.mxu0 %v533
        %1299 = vmatprep.subr.mxu0 0.0
        %1300 = vmatpush2.msra.mxu0 0.0
        %1301 = vmatprep.subr.mxu0 0.0
        %1302 = vmatpush2.msra.mxu0 0.0
        %1303 = vmatprep.subr.mxu0 0.0
        %1304 = vmatpush2.msra.mxu0 0.0
        %1305 = vmatprep.subr.mxu0 0.0
        %1306 = vmatpush2.msra.mxu0 0.0
        %1307 = vmatprep.subr.mxu0 0.0
        %1308 = vmatpush2.msra.mxu0 0.0
        %1309 = vmatprep.subr.mxu0 0.0
        %1310 = vmatpush2.msra.mxu0 0.0
        %1311 = vmatprep.subr.mxu0 0.0
        %1312 = vmatpush2.msra.mxu0 0.0
        %1313 = vmatprep.subr.mxu0 0.0
        %1314 = vmatpush2.msra.mxu0 0.0
        %1315 = vmatprep.subr.mxu0 0.0
        %1316 = vmatpush2.msra.mxu0 0.0
        %1317 = vmatprep.subr.mxu0 0.0
        %1318 = vmatpush2.msra.mxu0 0.0
        %1319 = vmatprep.subr.mxu0 0.0
        %1320 = vmatpush2.msra.mxu0 0.0
        %1321 = vmatprep.subr.mxu0 0.0
        %1322 = vmatpush2.msra.mxu0 0.0
        %1323 = vmatprep.subr.mxu0 0.0
        %1324 = vmatpush2.msra.mxu0 0.0
        %1325 = vmatprep.subr.mxu0 0.0
        %1326 = vmatpush2.msra.mxu0 0.0
        %1327 = vmatprep.subr.mxu0 0.0
        %1328 = vmatpush2.msra.mxu0 0.0
        %1329 = vmatprep.subr.mxu0 0.0
        %1330 = vmatpush2.msra.mxu0 0.0
        %1331 = vmatprep.mubr.f32.mxu0 0.0
        %1332 = vmatmul.mubr.f32.gmra.mxu0 %v1265
        %v1333 = vpop.f32.mrf.mxu0
        %v1334 = vadd.f32 0.0, %v1333
        %v1335 = vpop.f32.mrf.mxu0
        %v1336 = vadd.f32 0.0, %v1335
        %1337 = vdwg.mxu0
        %v1339 = vcombine.high %v1262, %v1262
        %vm1340 = vcmask 31744
        %v1342 = vsel %vm1340, %v352, 0
        %vm1344 = vcmask 1043456
        %v1345 = vsel %vm1344, %v1262, 0
        %v1347 = vsel %vm1344, %v1339, 0
        %1349 = vmatprep.subr.mxu0 0.0
        %1350 = vmatpush1.msra.mxu0 0.0
        %1351 = vmatprep.subr.mxu0 0.0
        %1352 = vmatpush1.msra.mxu0 0.0
        %1353 = vmatprep.subr.mxu0 0.0
        %1354 = vmatpush1.msra.mxu0 0.0
        %1355 = vmatprep.subr.mxu0 0.0
        %1356 = vmatpush1.msra.mxu0 0.0
        %1357 = vmatprep.subr.mxu0 0.0
        %1358 = vmatpush1.msra.mxu0 0.0
        %1359 = vmatprep.subr.mxu0 0.0
        %1360 = vmatpush1.msra.mxu0 0.0
        %1361 = vmatprep.subr.mxu0 0.0
        %1362 = vmatpush1.msra.mxu0 0.0
        %1363 = vmatprep.subr.mxu0 0.0
        %1364 = vmatpush1.msra.mxu0 0.0
        %1365 = vmatprep.subr.mxu0 0.0
        %1366 = vmatpush1.msra.mxu0 0.0
        %1367 = vmatprep.subr.mxu0 0.0
        %1368 = vmatpush1.msra.mxu0 0.0
        %1369 = vmatprep.subr.mxu0 0.0
        %1370 = vmatpush1.msra.mxu0 0.0
        %1371 = vmatprep.subr.mxu0 0.0
        %1372 = vmatpush1.msra.mxu0 0.0
        %1373 = vmatprep.subr.mxu0 0.0
        %1374 = vmatpush1.msra.mxu0 0.0
        %1375 = vmatprep.subr.mxu0 0.0
        %1376 = vmatpush1.msra.mxu0 0.0
        %1377 = vmatprep.subr.mxu0 0.0
        %1378 = vmatpush1.msra.mxu0 0.0
        %1379 = vmatprep.subr.mxu0 %v1347
        %1380 = vmatpush1.msra.mxu0 %v1345
        %1381 = vmatprep.subr.mxu0 0.0
        %1382 = vmatpush2.msra.mxu0 0.0
        %1383 = vmatprep.subr.mxu0 0.0
        %1384 = vmatpush2.msra.mxu0 0.0
        %1385 = vmatprep.subr.mxu0 0.0
        %1386 = vmatpush2.msra.mxu0 0.0
        %1387 = vmatprep.subr.mxu0 0.0
        %1388 = vmatpush2.msra.mxu0 0.0
        %1389 = vmatprep.subr.mxu0 0.0
        %1390 = vmatpush2.msra.mxu0 0.0
        %1391 = vmatprep.subr.mxu0 0.0
        %1392 = vmatpush2.msra.mxu0 0.0
        %1393 = vmatprep.subr.mxu0 0.0
        %1394 = vmatpush2.msra.mxu0 0.0
        %1395 = vmatprep.subr.mxu0 0.0
        %1396 = vmatpush2.msra.mxu0 0.0
        %1397 = vmatprep.subr.mxu0 0.0
        %1398 = vmatpush2.msra.mxu0 0.0
        %1399 = vmatprep.subr.mxu0 0.0
        %1400 = vmatpush2.msra.mxu0 0.0
        %1401 = vmatprep.subr.mxu0 0.0
        %1402 = vmatpush2.msra.mxu0 0.0
        %1403 = vmatprep.subr.mxu0 0.0
        %1404 = vmatpush2.msra.mxu0 0.0
        %1405 = vmatprep.subr.mxu0 0.0
        %1406 = vmatpush2.msra.mxu0 0.0
        %1407 = vmatprep.subr.mxu0 0.0
        %1408 = vmatpush2.msra.mxu0 0.0
        %1409 = vmatprep.subr.mxu0 0.0
        %1410 = vmatpush2.msra.mxu0 0.0
        %1411 = vmatprep.subr.mxu0 0.0
        %1412 = vmatpush2.msra.mxu0 0.0
        %1413 = vmatprep.mubr.f32.mxu0 0.0
        %1414 = vmatmul.mubr.f32.gmra.mxu0 %v1342
        %v1415 = vpop.f32.mrf.mxu0
        %v1416 = vadd.f32 %v1334, %v1415
        %v1417 = vpop.f32.mrf.mxu0
        %v1418 = vadd.f32 %v1336, %v1417
        %1419 = vdwg.mxu0
        %s1420 = smul.u32 %s25, 2
        %s1421 = smul.u32 %s1420, 4
        %s1422 = scalar_lea.vmem %s2, %s1421
        %v1423 = vld [vmem:[%s1422] sm:$0xf]
        %1425 = vset.pattern.permute.xlu0 0
        %1426 = vperm.xlu0 %1425, %v1423
        %v1427 = vpop.permute.xlu0 %1426
        %v1429 = vadd.f32 %v1416, %v1427
        %v1430 = vadd.f32 %v1418, %v1427
        %v1433 = vcombine.low %v1429, %v1430
        %1435 = vst [vmem:[%s326] sm:$0xff] %v1433
        %s1436 = scalar_lea.vmem %s347, 2
        %v1437 = vld [vmem:[%s1436] sm:$0x3]
        %v1439 = vlaneseq
        %v1440 = vshrl.u32 %v1439, 7
        %v1441 = vsub.s32 0, %v1440
        %v1442 = vrot.slane %v1437, %v1441
        %v1443 = vlaneseq
        %v1444 = vshrl.u32 %v1443, 7
        %v1445 = vsub.s32 1, %v1444
        %v1446 = vrot.slane %v1437, %v1445
        %v1449 = vmul.f32 %v366, %v1442
        %v1450 = vmul.f32 %v366, %v1446
        %v1451 = vmul.f32 %v371, %v1442
        %v1452 = vmul.f32 %v371, %v1446
        %v1453 = vmul.f32 %v376, %v1442
        %v1454 = vmul.f32 %v376, %v1446
        %v1455 = vmul.f32 %v381, %v1442
        %v1456 = vmul.f32 %v381, %v1446
        %v1457 = vadd.f32 %v1449, %v405
        %v1458 = vadd.f32 %v1450, %v405
        %v1459 = vadd.f32 %v1451, %v410
        %v1460 = vadd.f32 %v1452, %v410
        %v1461 = vadd.f32 %v1453, %v415
        %v1462 = vadd.f32 %v1454, %v415
        %v1463 = vadd.f32 %v1455, %v420
        %v1464 = vadd.f32 %v1456, %v420
        %v1465 = vand.u32 2147483647, %v1457
        %vm1466 = vcmp.le.f32.partialorder %v1465, 0.7853982
        %vm1467 = vcmp.lt.s32.totalorder %v1457, 0
        %v1468 = vand.u32 %v1457, 2139095040
        %v1469 = vshrl.u32 %v1468, 23
        %v1470 = vsub.s32 %v1469, 127
        %v1471 = vand.u32 2147483647, %v1457
        %v1472 = vand.u32 %v1471, 8388607
        %v1473 = vor.u32 %v1472, 8388608
        %v1474 = vsub.s32 0, %v1473
        %v1475 = vadd.s32 %v1470, 1
        %vm1476 = vcmp.gt.s32.totalorder %v1475, 0
        %v1477 = vsel %vm1476, %v1475, 0
        %v1478 = vshrl.u32 %v1477, 5
        %v1479 = vand.u32 %v1477, 31
        %v1480 = vsub.s32 32, %v1479
        %v1481 = vshrl.u32 683565275, %v1480
        %v1482 = vshll.u32 683565275, %v1479
        %v1483 = vshrl.u32 2475754826, %v1480
        %v1484 = vor.u32 %v1482, %v1483
        %v1485 = vshll.u32 2475754826, %v1479
        %v1486 = vshrl.u32 2131351028, %v1480
        %v1487 = vor.u32 %v1485, %v1486
        %v1488 = vshll.u32 2131351028, %v1479
        %v1489 = vshrl.u32 2102212464, %v1480
        %v1490 = vor.u32 %v1488, %v1489
        %v1491 = vshll.u32 2102212464, %v1479
        %v1492 = vshrl.u32 920167782, %v1480
        %v1493 = vor.u32 %v1491, %v1492
        %v1494 = vshll.u32 920167782, %v1479
        %v1495 = vshrl.u32 1326507024, %v1480
        %v1496 = vor.u32 %v1494, %v1495
        %vm1497 = vcmp.lt.s32.totalorder %v1478, 1
        %vm1498 = vcmp.lt.s32.totalorder %v1478, 2
        %vm1499 = vcmp.lt.s32.totalorder %v1478, 3
        %vm1500 = vcmp.lt.s32.totalorder %v1478, 4
        %v1501 = vsel %vm1497, %v1481, %v1484
        %v1502 = vsel %vm1500, %v1490, 2102212464
        %v1503 = vsel %vm1499, %v1487, %v1502
        %v1504 = vsel %vm1498, %v1501, %v1503
        %v1505 = vsel %vm1497, %v1484, %v1487
        %v1506 = vsel %vm1500, %v1493, 920167782
        %v1507 = vsel %vm1499, %v1490, %v1506
        %v1508 = vsel %vm1498, %v1505, %v1507
        %v1509 = vsel %vm1497, %v1487, %v1490
        %v1510 = vsel %vm1500, %v1496, 1326507024
        %v1511 = vsel %vm1499, %v1493, %v1510
        %v1512 = vsel %vm1498, %v1509, %v1511
        %v1513 = vshll.u32 %v1473, 8
        %v1514 = vmul.u32.u64.compose %v1513, %v1512
        %v1515 = vextract.low.u32 %v1514
        %v1516 = vextract.high.u32 %v1514
        %v1517 = vmul.u32.u64.compose %v1513, %v1508
        %v1518 = vextract.low.u32 %v1517
        %v1519 = vextract.high.u32 %v1517
        %v1520 = vmul.u32 %v1513, %v1504
        %v1521 = vadd.s32 %v1516, %v1518
        %vm1522 = vc.u32 %v1516, %v1518
        %v1523 = vadd.s32 %v1519, 1
        %v1524 = vsel %vm1522, %v1523, %v1519
        %v1525 = vadd.s32 %v1520, %v1524
        %v1526 = vadd.s32 %v1525, 536870912
        %v1527 = vshrl.u32 %v1526, 30
        %v1528 = vshll.u32 %v1527, 30
        %v1529 = vsub.s32 %v1525, %v1528
        %vm1530 = vcmp.lt.s32.totalorder %v1529, 0
        %v1531 = vsub.s32 0, %v1529
        %v1532 = vsel %vm1530, %v1531, %v1529
        %v1533 = vclz %v1532
        %v1534 = vsub.s32 %v1533, 2
        %vm1535 = vcmp.gt.s32.totalorder 0, %v1534
        %v1536 = vsel %vm1535, 0, %v1534
        %v1537 = vsub.s32 32, %v1536
        %v1538 = vshll.u32 %v1529, %v1536
        %v1539 = vshrl.u32 %v1521, %v1537
        %v1540 = vor.u32 %v1538, %v1539
        %v1541 = vsub.s32 4294967266, %v1536
        %v1542 = vadd.s32 %v1541, 127
        %v1543 = vshll.u32 %v1542, 23
        %v1544 = vor.u32 4788187, %v1543
        %v1545 = vand.u32 2147483647, %v1544
        %v1547 = vcvt.s32.f32 %v1540
        %v1548 = vmul.f32 %v1547, %v1545
        %v1549 = vxor.u32 %v1548, 2147483648
        %v1550 = vsel %vm1467, %v1549, %v1548
        %v1551 = vsub.s32 4, %v1527
        %v1552 = vsel %vm1467, %v1551, %v1527
        %v1553 = vsel %vm1466, %v1457, %v1550
        %v1554 = vsel %vm1466, 0, %v1552
        %v1555 = vcosq.f32.pop %v1553
        %v1556 = vsinq.f32.pop %v1553
        %vm1557 = vweird.f32 %v1457
        %v1558 = vadd.s32 %v1554, 3
        %v1559 = vand.u32 %v1558, 3
        %vm1560 = vcmp.lt.s32.totalorder %v1559, 2
        %vm1561 = vcmp.eq.s32.totalorder %v1559, 0
        %v1562 = vxor.u32 %v1556, 2147483648
        %v1563 = vsel %vm1561, %v1555, %v1562
        %vm1564 = vcmp.eq.s32.totalorder %v1559, 2
        %v1565 = vxor.u32 %v1555, 2147483648
        %v1566 = vsel %vm1564, %v1565, %v1556
        %v1567 = vsel %vm1560, %v1563, %v1566
        %v1568 = vsel %vm1557, nan, %v1567
        %v1569 = vand.u32 2147483647, %v1458
        %vm1570 = vcmp.le.f32.partialorder %v1569, 0.7853982
        %vm1571 = vcmp.lt.s32.totalorder %v1458, 0
        %v1572 = vand.u32 %v1458, 2139095040
        %v1573 = vshrl.u32 %v1572, 23
        %v1574 = vsub.s32 %v1573, 127
        %v1575 = vand.u32 2147483647, %v1458
        %v1576 = vand.u32 %v1575, 8388607
        %v1577 = vor.u32 %v1576, 8388608
        %v1578 = vsub.s32 0, %v1577
        %v1579 = vadd.s32 %v1574, 1
        %vm1580 = vcmp.gt.s32.totalorder %v1579, 0
        %v1581 = vsel %vm1580, %v1579, 0
        %v1582 = vshrl.u32 %v1581, 5
        %v1583 = vand.u32 %v1581, 31
        %v1584 = vsub.s32 32, %v1583
        %v1585 = vshrl.u32 683565275, %v1584
        %v1586 = vshll.u32 683565275, %v1583
        %v1587 = vshrl.u32 2475754826, %v1584
        %v1588 = vor.u32 %v1586, %v1587
        %v1589 = vshll.u32 2475754826, %v1583
        %v1590 = vshrl.u32 2131351028, %v1584
        %v1591 = vor.u32 %v1589, %v1590
        %v1592 = vshll.u32 2131351028, %v1583
        %v1593 = vshrl.u32 2102212464, %v1584
        %v1594 = vor.u32 %v1592, %v1593
        %v1595 = vshll.u32 2102212464, %v1583
        %v1596 = vshrl.u32 920167782, %v1584
        %v1597 = vor.u32 %v1595, %v1596
        %v1598 = vshll.u32 920167782, %v1583
        %v1599 = vshrl.u32 1326507024, %v1584
        %v1600 = vor.u32 %v1598, %v1599
        %vm1601 = vcmp.lt.s32.totalorder %v1582, 1
        %vm1602 = vcmp.lt.s32.totalorder %v1582, 2
        %vm1603 = vcmp.lt.s32.totalorder %v1582, 3
        %vm1604 = vcmp.lt.s32.totalorder %v1582, 4
        %v1605 = vsel %vm1601, %v1585, %v1588
        %v1606 = vsel %vm1604, %v1594, 2102212464
        %v1607 = vsel %vm1603, %v1591, %v1606
        %v1608 = vsel %vm1602, %v1605, %v1607
        %v1609 = vsel %vm1601, %v1588, %v1591
        %v1610 = vsel %vm1604, %v1597, 920167782
        %v1611 = vsel %vm1603, %v1594, %v1610
        %v1612 = vsel %vm1602, %v1609, %v1611
        %v1613 = vsel %vm1601, %v1591, %v1594
        %v1614 = vsel %vm1604, %v1600, 1326507024
        %v1615 = vsel %vm1603, %v1597, %v1614
        %v1616 = vsel %vm1602, %v1613, %v1615
        %v1617 = vshll.u32 %v1577, 8
        %v1618 = vmul.u32.u64.compose %v1617, %v1616
        %v1619 = vextract.low.u32 %v1618
        %v1620 = vextract.high.u32 %v1618
        %v1621 = vmul.u32.u64.compose %v1617, %v1612
        %v1622 = vextract.low.u32 %v1621
        %v1623 = vextract.high.u32 %v1621
        %v1624 = vmul.u32 %v1617, %v1608
        %v1625 = vadd.s32 %v1620, %v1622
        %vm1626 = vc.u32 %v1620, %v1622
        %v1627 = vadd.s32 %v1623, 1
        %v1628 = vsel %vm1626, %v1627, %v1623
        %v1629 = vadd.s32 %v1624, %v1628
        %v1630 = vadd.s32 %v1629, 536870912
        %v1631 = vshrl.u32 %v1630, 30
        %v1632 = vshll.u32 %v1631, 30
        %v1633 = vsub.s32 %v1629, %v1632
        %vm1634 = vcmp.lt.s32.totalorder %v1633, 0
        %v1635 = vsub.s32 0, %v1633
        %v1636 = vsel %vm1634, %v1635, %v1633
        %v1637 = vclz %v1636
        %v1638 = vsub.s32 %v1637, 2
        %vm1639 = vcmp.gt.s32.totalorder 0, %v1638
        %v1640 = vsel %vm1639, 0, %v1638
        %v1641 = vsub.s32 32, %v1640
        %v1642 = vshll.u32 %v1633, %v1640
        %v1643 = vshrl.u32 %v1625, %v1641
        %v1644 = vor.u32 %v1642, %v1643
        %v1645 = vsub.s32 4294967266, %v1640
        %v1646 = vadd.s32 %v1645, 127
        %v1647 = vshll.u32 %v1646, 23
        %v1648 = vor.u32 4788187, %v1647
        %v1649 = vand.u32 2147483647, %v1648
        %v1651 = vcvt.s32.f32 %v1644
        %v1652 = vmul.f32 %v1651, %v1649
        %v1653 = vxor.u32 %v1652, 2147483648
        %v1654 = vsel %vm1571, %v1653, %v1652
        %v1655 = vsub.s32 4, %v1631
        %v1656 = vsel %vm1571, %v1655, %v1631
        %v1657 = vsel %vm1570, %v1458, %v1654
        %v1658 = vsel %vm1570, 0, %v1656
        %v1659 = vcosq.f32.pop %v1657
        %v1660 = vsinq.f32.pop %v1657
        %vm1661 = vweird.f32 %v1458
        %v1662 = vadd.s32 %v1658, 3
        %v1663 = vand.u32 %v1662, 3
        %vm1664 = vcmp.lt.s32.totalorder %v1663, 2
        %vm1665 = vcmp.eq.s32.totalorder %v1663, 0
        %v1666 = vxor.u32 %v1660, 2147483648
        %v1667 = vsel %vm1665, %v1659, %v1666
        %vm1668 = vcmp.eq.s32.totalorder %v1663, 2
        %v1669 = vxor.u32 %v1659, 2147483648
        %v1670 = vsel %vm1668, %v1669, %v1660
        %v1671 = vsel %vm1664, %v1667, %v1670
        %v1672 = vsel %vm1661, nan, %v1671
        %v1673 = vand.u32 2147483647, %v1459
        %vm1674 = vcmp.le.f32.partialorder %v1673, 0.7853982
        %vm1675 = vcmp.lt.s32.totalorder %v1459, 0
        %v1676 = vand.u32 %v1459, 2139095040
        %v1677 = vshrl.u32 %v1676, 23
        %v1678 = vsub.s32 %v1677, 127
        %v1679 = vand.u32 2147483647, %v1459
        %v1680 = vand.u32 %v1679, 8388607
        %v1681 = vor.u32 %v1680, 8388608
        %v1682 = vsub.s32 0, %v1681
        %v1683 = vadd.s32 %v1678, 1
        %vm1684 = vcmp.gt.s32.totalorder %v1683, 0
        %v1685 = vsel %vm1684, %v1683, 0
        %v1686 = vshrl.u32 %v1685, 5
        %v1687 = vand.u32 %v1685, 31
        %v1688 = vsub.s32 32, %v1687
        %v1689 = vshrl.u32 683565275, %v1688
        %v1690 = vshll.u32 683565275, %v1687
        %v1691 = vshrl.u32 2475754826, %v1688
        %v1692 = vor.u32 %v1690, %v1691
        %v1693 = vshll.u32 2475754826, %v1687
        %v1694 = vshrl.u32 2131351028, %v1688
        %v1695 = vor.u32 %v1693, %v1694
        %v1696 = vshll.u32 2131351028, %v1687
        %v1697 = vshrl.u32 2102212464, %v1688
        %v1698 = vor.u32 %v1696, %v1697
        %v1699 = vshll.u32 2102212464, %v1687
        %v1700 = vshrl.u32 920167782, %v1688
        %v1701 = vor.u32 %v1699, %v1700
        %v1702 = vshll.u32 920167782, %v1687
        %v1703 = vshrl.u32 1326507024, %v1688
        %v1704 = vor.u32 %v1702, %v1703
        %vm1705 = vcmp.lt.s32.totalorder %v1686, 1
        %vm1706 = vcmp.lt.s32.totalorder %v1686, 2
        %vm1707 = vcmp.lt.s32.totalorder %v1686, 3
        %vm1708 = vcmp.lt.s32.totalorder %v1686, 4
        %v1709 = vsel %vm1705, %v1689, %v1692
        %v1710 = vsel %vm1708, %v1698, 2102212464
        %v1711 = vsel %vm1707, %v1695, %v1710
        %v1712 = vsel %vm1706, %v1709, %v1711
        %v1713 = vsel %vm1705, %v1692, %v1695
        %v1714 = vsel %vm1708, %v1701, 920167782
        %v1715 = vsel %vm1707, %v1698, %v1714
        %v1716 = vsel %vm1706, %v1713, %v1715
        %v1717 = vsel %vm1705, %v1695, %v1698
        %v1718 = vsel %vm1708, %v1704, 1326507024
        %v1719 = vsel %vm1707, %v1701, %v1718
        %v1720 = vsel %vm1706, %v1717, %v1719
        %v1721 = vshll.u32 %v1681, 8
        %v1722 = vmul.u32.u64.compose %v1721, %v1720
        %v1723 = vextract.low.u32 %v1722
        %v1724 = vextract.high.u32 %v1722
        %v1725 = vmul.u32.u64.compose %v1721, %v1716
        %v1726 = vextract.low.u32 %v1725
        %v1727 = vextract.high.u32 %v1725
        %v1728 = vmul.u32 %v1721, %v1712
        %v1729 = vadd.s32 %v1724, %v1726
        %vm1730 = vc.u32 %v1724, %v1726
        %v1731 = vadd.s32 %v1727, 1
        %v1732 = vsel %vm1730, %v1731, %v1727
        %v1733 = vadd.s32 %v1728, %v1732
        %v1734 = vadd.s32 %v1733, 536870912
        %v1735 = vshrl.u32 %v1734, 30
        %v1736 = vshll.u32 %v1735, 30
        %v1737 = vsub.s32 %v1733, %v1736
        %vm1738 = vcmp.lt.s32.totalorder %v1737, 0
        %v1739 = vsub.s32 0, %v1737
        %v1740 = vsel %vm1738, %v1739, %v1737
        %v1741 = vclz %v1740
        %v1742 = vsub.s32 %v1741, 2
        %vm1743 = vcmp.gt.s32.totalorder 0, %v1742
        %v1744 = vsel %vm1743, 0, %v1742
        %v1745 = vsub.s32 32, %v1744
        %v1746 = vshll.u32 %v1737, %v1744
        %v1747 = vshrl.u32 %v1729, %v1745
        %v1748 = vor.u32 %v1746, %v1747
        %v1749 = vsub.s32 4294967266, %v1744
        %v1750 = vadd.s32 %v1749, 127
        %v1751 = vshll.u32 %v1750, 23
        %v1752 = vor.u32 4788187, %v1751
        %v1753 = vand.u32 2147483647, %v1752
        %v1755 = vcvt.s32.f32 %v1748
        %v1756 = vmul.f32 %v1755, %v1753
        %v1757 = vxor.u32 %v1756, 2147483648
        %v1758 = vsel %vm1675, %v1757, %v1756
        %v1759 = vsub.s32 4, %v1735
        %v1760 = vsel %vm1675, %v1759, %v1735
        %v1761 = vsel %vm1674, %v1459, %v1758
        %v1762 = vsel %vm1674, 0, %v1760
        %v1763 = vcosq.f32.pop %v1761
        %v1764 = vsinq.f32.pop %v1761
        %vm1765 = vweird.f32 %v1459
        %v1766 = vadd.s32 %v1762, 3
        %v1767 = vand.u32 %v1766, 3
        %vm1768 = vcmp.lt.s32.totalorder %v1767, 2
        %vm1769 = vcmp.eq.s32.totalorder %v1767, 0
        %v1770 = vxor.u32 %v1764, 2147483648
        %v1771 = vsel %vm1769, %v1763, %v1770
        %vm1772 = vcmp.eq.s32.totalorder %v1767, 2
        %v1773 = vxor.u32 %v1763, 2147483648
        %v1774 = vsel %vm1772, %v1773, %v1764
        %v1775 = vsel %vm1768, %v1771, %v1774
        %v1776 = vsel %vm1765, nan, %v1775
        %v1777 = vand.u32 2147483647, %v1460
        %vm1778 = vcmp.le.f32.partialorder %v1777, 0.7853982
        %vm1779 = vcmp.lt.s32.totalorder %v1460, 0
        %v1780 = vand.u32 %v1460, 2139095040
        %v1781 = vshrl.u32 %v1780, 23
        %v1782 = vsub.s32 %v1781, 127
        %v1783 = vand.u32 2147483647, %v1460
        %v1784 = vand.u32 %v1783, 8388607
        %v1785 = vor.u32 %v1784, 8388608
        %v1786 = vsub.s32 0, %v1785
        %v1787 = vadd.s32 %v1782, 1
        %vm1788 = vcmp.gt.s32.totalorder %v1787, 0
        %v1789 = vsel %vm1788, %v1787, 0
        %v1790 = vshrl.u32 %v1789, 5
        %v1791 = vand.u32 %v1789, 31
        %v1792 = vsub.s32 32, %v1791
        %v1793 = vshrl.u32 683565275, %v1792
        %v1794 = vshll.u32 683565275, %v1791
        %v1795 = vshrl.u32 2475754826, %v1792
        %v1796 = vor.u32 %v1794, %v1795
        %v1797 = vshll.u32 2475754826, %v1791
        %v1798 = vshrl.u32 2131351028, %v1792
        %v1799 = vor.u32 %v1797, %v1798
        %v1800 = vshll.u32 2131351028, %v1791
        %v1801 = vshrl.u32 2102212464, %v1792
        %v1802 = vor.u32 %v1800, %v1801
        %v1803 = vshll.u32 2102212464, %v1791
        %v1804 = vshrl.u32 920167782, %v1792
        %v1805 = vor.u32 %v1803, %v1804
        %v1806 = vshll.u32 920167782, %v1791
        %v1807 = vshrl.u32 1326507024, %v1792
        %v1808 = vor.u32 %v1806, %v1807
        %vm1809 = vcmp.lt.s32.totalorder %v1790, 1
        %vm1810 = vcmp.lt.s32.totalorder %v1790, 2
        %vm1811 = vcmp.lt.s32.totalorder %v1790, 3
        %vm1812 = vcmp.lt.s32.totalorder %v1790, 4
        %v1813 = vsel %vm1809, %v1793, %v1796
        %v1814 = vsel %vm1812, %v1802, 2102212464
        %v1815 = vsel %vm1811, %v1799, %v1814
        %v1816 = vsel %vm1810, %v1813, %v1815
        %v1817 = vsel %vm1809, %v1796, %v1799
        %v1818 = vsel %vm1812, %v1805, 920167782
        %v1819 = vsel %vm1811, %v1802, %v1818
        %v1820 = vsel %vm1810, %v1817, %v1819
        %v1821 = vsel %vm1809, %v1799, %v1802
        %v1822 = vsel %vm1812, %v1808, 1326507024
        %v1823 = vsel %vm1811, %v1805, %v1822
        %v1824 = vsel %vm1810, %v1821, %v1823
        %v1825 = vshll.u32 %v1785, 8
        %v1826 = vmul.u32.u64.compose %v1825, %v1824
        %v1827 = vextract.low.u32 %v1826
        %v1828 = vextract.high.u32 %v1826
        %v1829 = vmul.u32.u64.compose %v1825, %v1820
        %v1830 = vextract.low.u32 %v1829
        %v1831 = vextract.high.u32 %v1829
        %v1832 = vmul.u32 %v1825, %v1816
        %v1833 = vadd.s32 %v1828, %v1830
        %vm1834 = vc.u32 %v1828, %v1830
        %v1835 = vadd.s32 %v1831, 1
        %v1836 = vsel %vm1834, %v1835, %v1831
        %v1837 = vadd.s32 %v1832, %v1836
        %v1838 = vadd.s32 %v1837, 536870912
        %v1839 = vshrl.u32 %v1838, 30
        %v1840 = vshll.u32 %v1839, 30
        %v1841 = vsub.s32 %v1837, %v1840
        %vm1842 = vcmp.lt.s32.totalorder %v1841, 0
        %v1843 = vsub.s32 0, %v1841
        %v1844 = vsel %vm1842, %v1843, %v1841
        %v1845 = vclz %v1844
        %v1846 = vsub.s32 %v1845, 2
        %vm1847 = vcmp.gt.s32.totalorder 0, %v1846
        %v1848 = vsel %vm1847, 0, %v1846
        %v1849 = vsub.s32 32, %v1848
        %v1850 = vshll.u32 %v1841, %v1848
        %v1851 = vshrl.u32 %v1833, %v1849
        %v1852 = vor.u32 %v1850, %v1851
        %v1853 = vsub.s32 4294967266, %v1848
        %v1854 = vadd.s32 %v1853, 127
        %v1855 = vshll.u32 %v1854, 23
        %v1856 = vor.u32 4788187, %v1855
        %v1857 = vand.u32 2147483647, %v1856
        %v1859 = vcvt.s32.f32 %v1852
        %v1860 = vmul.f32 %v1859, %v1857
        %v1861 = vxor.u32 %v1860, 2147483648
        %v1862 = vsel %vm1779, %v1861, %v1860
        %v1863 = vsub.s32 4, %v1839
        %v1864 = vsel %vm1779, %v1863, %v1839
        %v1865 = vsel %vm1778, %v1460, %v1862
        %v1866 = vsel %vm1778, 0, %v1864
        %v1867 = vcosq.f32.pop %v1865
        %v1868 = vsinq.f32.pop %v1865
        %vm1869 = vweird.f32 %v1460
        %v1870 = vadd.s32 %v1866, 3
        %v1871 = vand.u32 %v1870, 3
        %vm1872 = vcmp.lt.s32.totalorder %v1871, 2
        %vm1873 = vcmp.eq.s32.totalorder %v1871, 0
        %v1874 = vxor.u32 %v1868, 2147483648
        %v1875 = vsel %vm1873, %v1867, %v1874
        %vm1876 = vcmp.eq.s32.totalorder %v1871, 2
        %v1877 = vxor.u32 %v1867, 2147483648
        %v1878 = vsel %vm1876, %v1877, %v1868
        %v1879 = vsel %vm1872, %v1875, %v1878
        %v1880 = vsel %vm1869, nan, %v1879
        %v1881 = vand.u32 2147483647, %v1461
        %vm1882 = vcmp.le.f32.partialorder %v1881, 0.7853982
        %vm1883 = vcmp.lt.s32.totalorder %v1461, 0
        %v1884 = vand.u32 %v1461, 2139095040
        %v1885 = vshrl.u32 %v1884, 23
        %v1886 = vsub.s32 %v1885, 127
        %v1887 = vand.u32 2147483647, %v1461
        %v1888 = vand.u32 %v1887, 8388607
        %v1889 = vor.u32 %v1888, 8388608
        %v1890 = vsub.s32 0, %v1889
        %v1891 = vadd.s32 %v1886, 1
        %vm1892 = vcmp.gt.s32.totalorder %v1891, 0
        %v1893 = vsel %vm1892, %v1891, 0
        %v1894 = vshrl.u32 %v1893, 5
        %v1895 = vand.u32 %v1893, 31
        %v1896 = vsub.s32 32, %v1895
        %v1897 = vshrl.u32 683565275, %v1896
        %v1898 = vshll.u32 683565275, %v1895
        %v1899 = vshrl.u32 2475754826, %v1896
        %v1900 = vor.u32 %v1898, %v1899
        %v1901 = vshll.u32 2475754826, %v1895
        %v1902 = vshrl.u32 2131351028, %v1896
        %v1903 = vor.u32 %v1901, %v1902
        %v1904 = vshll.u32 2131351028, %v1895
        %v1905 = vshrl.u32 2102212464, %v1896
        %v1906 = vor.u32 %v1904, %v1905
        %v1907 = vshll.u32 2102212464, %v1895
        %v1908 = vshrl.u32 920167782, %v1896
        %v1909 = vor.u32 %v1907, %v1908
        %v1910 = vshll.u32 920167782, %v1895
        %v1911 = vshrl.u32 1326507024, %v1896
        %v1912 = vor.u32 %v1910, %v1911
        %vm1913 = vcmp.lt.s32.totalorder %v1894, 1
        %vm1914 = vcmp.lt.s32.totalorder %v1894, 2
        %vm1915 = vcmp.lt.s32.totalorder %v1894, 3
        %vm1916 = vcmp.lt.s32.totalorder %v1894, 4
        %v1917 = vsel %vm1913, %v1897, %v1900
        %v1918 = vsel %vm1916, %v1906, 2102212464
        %v1919 = vsel %vm1915, %v1903, %v1918
        %v1920 = vsel %vm1914, %v1917, %v1919
        %v1921 = vsel %vm1913, %v1900, %v1903
        %v1922 = vsel %vm1916, %v1909, 920167782
        %v1923 = vsel %vm1915, %v1906, %v1922
        %v1924 = vsel %vm1914, %v1921, %v1923
        %v1925 = vsel %vm1913, %v1903, %v1906
        %v1926 = vsel %vm1916, %v1912, 1326507024
        %v1927 = vsel %vm1915, %v1909, %v1926
        %v1928 = vsel %vm1914, %v1925, %v1927
        %v1929 = vshll.u32 %v1889, 8
        %v1930 = vmul.u32.u64.compose %v1929, %v1928
        %v1931 = vextract.low.u32 %v1930
        %v1932 = vextract.high.u32 %v1930
        %v1933 = vmul.u32.u64.compose %v1929, %v1924
        %v1934 = vextract.low.u32 %v1933
        %v1935 = vextract.high.u32 %v1933
        %v1936 = vmul.u32 %v1929, %v1920
        %v1937 = vadd.s32 %v1932, %v1934
        %vm1938 = vc.u32 %v1932, %v1934
        %v1939 = vadd.s32 %v1935, 1
        %v1940 = vsel %vm1938, %v1939, %v1935
        %v1941 = vadd.s32 %v1936, %v1940
        %v1942 = vadd.s32 %v1941, 536870912
        %v1943 = vshrl.u32 %v1942, 30
        %v1944 = vshll.u32 %v1943, 30
        %v1945 = vsub.s32 %v1941, %v1944
        %vm1946 = vcmp.lt.s32.totalorder %v1945, 0
        %v1947 = vsub.s32 0, %v1945
        %v1948 = vsel %vm1946, %v1947, %v1945
        %v1949 = vclz %v1948
        %v1950 = vsub.s32 %v1949, 2
        %vm1951 = vcmp.gt.s32.totalorder 0, %v1950
        %v1952 = vsel %vm1951, 0, %v1950
        %v1953 = vsub.s32 32, %v1952
        %v1954 = vshll.u32 %v1945, %v1952
        %v1955 = vshrl.u32 %v1937, %v1953
        %v1956 = vor.u32 %v1954, %v1955
        %v1957 = vsub.s32 4294967266, %v1952
        %v1958 = vadd.s32 %v1957, 127
        %v1959 = vshll.u32 %v1958, 23
        %v1960 = vor.u32 4788187, %v1959
        %v1961 = vand.u32 2147483647, %v1960
        %v1963 = vcvt.s32.f32 %v1956
        %v1964 = vmul.f32 %v1963, %v1961
        %v1965 = vxor.u32 %v1964, 2147483648
        %v1966 = vsel %vm1883, %v1965, %v1964
        %v1967 = vsub.s32 4, %v1943
        %v1968 = vsel %vm1883, %v1967, %v1943
        %v1969 = vsel %vm1882, %v1461, %v1966
        %v1970 = vsel %vm1882, 0, %v1968
        %v1971 = vcosq.f32.pop %v1969
        %v1972 = vsinq.f32.pop %v1969
        %vm1973 = vweird.f32 %v1461
        %v1974 = vadd.s32 %v1970, 3
        %v1975 = vand.u32 %v1974, 3
        %vm1976 = vcmp.lt.s32.totalorder %v1975, 2
        %vm1977 = vcmp.eq.s32.totalorder %v1975, 0
        %v1978 = vxor.u32 %v1972, 2147483648
        %v1979 = vsel %vm1977, %v1971, %v1978
        %vm1980 = vcmp.eq.s32.totalorder %v1975, 2
        %v1981 = vxor.u32 %v1971, 2147483648
        %v1982 = vsel %vm1980, %v1981, %v1972
        %v1983 = vsel %vm1976, %v1979, %v1982
        %v1984 = vsel %vm1973, nan, %v1983
        %v1985 = vand.u32 2147483647, %v1462
        %vm1986 = vcmp.le.f32.partialorder %v1985, 0.7853982
        %vm1987 = vcmp.lt.s32.totalorder %v1462, 0
        %v1988 = vand.u32 %v1462, 2139095040
        %v1989 = vshrl.u32 %v1988, 23
        %v1990 = vsub.s32 %v1989, 127
        %v1991 = vand.u32 2147483647, %v1462
        %v1992 = vand.u32 %v1991, 8388607
        %v1993 = vor.u32 %v1992, 8388608
        %v1994 = vsub.s32 0, %v1993
        %v1995 = vadd.s32 %v1990, 1
        %vm1996 = vcmp.gt.s32.totalorder %v1995, 0
        %v1997 = vsel %vm1996, %v1995, 0
        %v1998 = vshrl.u32 %v1997, 5
        %v1999 = vand.u32 %v1997, 31
        %v2000 = vsub.s32 32, %v1999
        %v2001 = vshrl.u32 683565275, %v2000
        %v2002 = vshll.u32 683565275, %v1999
        %v2003 = vshrl.u32 2475754826, %v2000
        %v2004 = vor.u32 %v2002, %v2003
        %v2005 = vshll.u32 2475754826, %v1999
        %v2006 = vshrl.u32 2131351028, %v2000
        %v2007 = vor.u32 %v2005, %v2006
        %v2008 = vshll.u32 2131351028, %v1999
        %v2009 = vshrl.u32 2102212464, %v2000
        %v2010 = vor.u32 %v2008, %v2009
        %v2011 = vshll.u32 2102212464, %v1999
        %v2012 = vshrl.u32 920167782, %v2000
        %v2013 = vor.u32 %v2011, %v2012
        %v2014 = vshll.u32 920167782, %v1999
        %v2015 = vshrl.u32 1326507024, %v2000
        %v2016 = vor.u32 %v2014, %v2015
        %vm2017 = vcmp.lt.s32.totalorder %v1998, 1
        %vm2018 = vcmp.lt.s32.totalorder %v1998, 2
        %vm2019 = vcmp.lt.s32.totalorder %v1998, 3
        %vm2020 = vcmp.lt.s32.totalorder %v1998, 4
        %v2021 = vsel %vm2017, %v2001, %v2004
        %v2022 = vsel %vm2020, %v2010, 2102212464
        %v2023 = vsel %vm2019, %v2007, %v2022
        %v2024 = vsel %vm2018, %v2021, %v2023
        %v2025 = vsel %vm2017, %v2004, %v2007
        %v2026 = vsel %vm2020, %v2013, 920167782
        %v2027 = vsel %vm2019, %v2010, %v2026
        %v2028 = vsel %vm2018, %v2025, %v2027
        %v2029 = vsel %vm2017, %v2007, %v2010
        %v2030 = vsel %vm2020, %v2016, 1326507024
        %v2031 = vsel %vm2019, %v2013, %v2030
        %v2032 = vsel %vm2018, %v2029, %v2031
        %v2033 = vshll.u32 %v1993, 8
        %v2034 = vmul.u32.u64.compose %v2033, %v2032
        %v2035 = vextract.low.u32 %v2034
        %v2036 = vextract.high.u32 %v2034
        %v2037 = vmul.u32.u64.compose %v2033, %v2028
        %v2038 = vextract.low.u32 %v2037
        %v2039 = vextract.high.u32 %v2037
        %v2040 = vmul.u32 %v2033, %v2024
        %v2041 = vadd.s32 %v2036, %v2038
        %vm2042 = vc.u32 %v2036, %v2038
        %v2043 = vadd.s32 %v2039, 1
        %v2044 = vsel %vm2042, %v2043, %v2039
        %v2045 = vadd.s32 %v2040, %v2044
        %v2046 = vadd.s32 %v2045, 536870912
        %v2047 = vshrl.u32 %v2046, 30
        %v2048 = vshll.u32 %v2047, 30
        %v2049 = vsub.s32 %v2045, %v2048
        %vm2050 = vcmp.lt.s32.totalorder %v2049, 0
        %v2051 = vsub.s32 0, %v2049
        %v2052 = vsel %vm2050, %v2051, %v2049
        %v2053 = vclz %v2052
        %v2054 = vsub.s32 %v2053, 2
        %vm2055 = vcmp.gt.s32.totalorder 0, %v2054
        %v2056 = vsel %vm2055, 0, %v2054
        %v2057 = vsub.s32 32, %v2056
        %v2058 = vshll.u32 %v2049, %v2056
        %v2059 = vshrl.u32 %v2041, %v2057
        %v2060 = vor.u32 %v2058, %v2059
        %v2061 = vsub.s32 4294967266, %v2056
        %v2062 = vadd.s32 %v2061, 127
        %v2063 = vshll.u32 %v2062, 23
        %v2064 = vor.u32 4788187, %v2063
        %v2065 = vand.u32 2147483647, %v2064
        %v2067 = vcvt.s32.f32 %v2060
        %v2068 = vmul.f32 %v2067, %v2065
        %v2069 = vxor.u32 %v2068, 2147483648
        %v2070 = vsel %vm1987, %v2069, %v2068
        %v2071 = vsub.s32 4, %v2047
        %v2072 = vsel %vm1987, %v2071, %v2047
        %v2073 = vsel %vm1986, %v1462, %v2070
        %v2074 = vsel %vm1986, 0, %v2072
        %v2075 = vcosq.f32.pop %v2073
        %v2076 = vsinq.f32.pop %v2073
        %vm2077 = vweird.f32 %v1462
        %v2078 = vadd.s32 %v2074, 3
        %v2079 = vand.u32 %v2078, 3
        %vm2080 = vcmp.lt.s32.totalorder %v2079, 2
        %vm2081 = vcmp.eq.s32.totalorder %v2079, 0
        %v2082 = vxor.u32 %v2076, 2147483648
        %v2083 = vsel %vm2081, %v2075, %v2082
        %vm2084 = vcmp.eq.s32.totalorder %v2079, 2
        %v2085 = vxor.u32 %v2075, 2147483648
        %v2086 = vsel %vm2084, %v2085, %v2076
        %v2087 = vsel %vm2080, %v2083, %v2086
        %v2088 = vsel %vm2077, nan, %v2087
        %v2089 = vand.u32 2147483647, %v1463
        %vm2090 = vcmp.le.f32.partialorder %v2089, 0.7853982
        %vm2091 = vcmp.lt.s32.totalorder %v1463, 0
        %v2092 = vand.u32 %v1463, 2139095040
        %v2093 = vshrl.u32 %v2092, 23
        %v2094 = vsub.s32 %v2093, 127
        %v2095 = vand.u32 2147483647, %v1463
        %v2096 = vand.u32 %v2095, 8388607
        %v2097 = vor.u32 %v2096, 8388608
        %v2098 = vsub.s32 0, %v2097
        %v2099 = vadd.s32 %v2094, 1
        %vm2100 = vcmp.gt.s32.totalorder %v2099, 0
        %v2101 = vsel %vm2100, %v2099, 0
        %v2102 = vshrl.u32 %v2101, 5
        %v2103 = vand.u32 %v2101, 31
        %v2104 = vsub.s32 32, %v2103
        %v2105 = vshrl.u32 683565275, %v2104
        %v2106 = vshll.u32 683565275, %v2103
        %v2107 = vshrl.u32 2475754826, %v2104
        %v2108 = vor.u32 %v2106, %v2107
        %v2109 = vshll.u32 2475754826, %v2103
        %v2110 = vshrl.u32 2131351028, %v2104
        %v2111 = vor.u32 %v2109, %v2110
        %v2112 = vshll.u32 2131351028, %v2103
        %v2113 = vshrl.u32 2102212464, %v2104
        %v2114 = vor.u32 %v2112, %v2113
        %v2115 = vshll.u32 2102212464, %v2103
        %v2116 = vshrl.u32 920167782, %v2104
        %v2117 = vor.u32 %v2115, %v2116
        %v2118 = vshll.u32 920167782, %v2103
        %v2119 = vshrl.u32 1326507024, %v2104
        %v2120 = vor.u32 %v2118, %v2119
        %vm2121 = vcmp.lt.s32.totalorder %v2102, 1
        %vm2122 = vcmp.lt.s32.totalorder %v2102, 2
        %vm2123 = vcmp.lt.s32.totalorder %v2102, 3
        %vm2124 = vcmp.lt.s32.totalorder %v2102, 4
        %v2125 = vsel %vm2121, %v2105, %v2108
        %v2126 = vsel %vm2124, %v2114, 2102212464
        %v2127 = vsel %vm2123, %v2111, %v2126
        %v2128 = vsel %vm2122, %v2125, %v2127
        %v2129 = vsel %vm2121, %v2108, %v2111
        %v2130 = vsel %vm2124, %v2117, 920167782
        %v2131 = vsel %vm2123, %v2114, %v2130
        %v2132 = vsel %vm2122, %v2129, %v2131
        %v2133 = vsel %vm2121, %v2111, %v2114
        %v2134 = vsel %vm2124, %v2120, 1326507024
        %v2135 = vsel %vm2123, %v2117, %v2134
        %v2136 = vsel %vm2122, %v2133, %v2135
        %v2137 = vshll.u32 %v2097, 8
        %v2138 = vmul.u32.u64.compose %v2137, %v2136
        %v2139 = vextract.low.u32 %v2138
        %v2140 = vextract.high.u32 %v2138
        %v2141 = vmul.u32.u64.compose %v2137, %v2132
        %v2142 = vextract.low.u32 %v2141
        %v2143 = vextract.high.u32 %v2141
        %v2144 = vmul.u32 %v2137, %v2128
        %v2145 = vadd.s32 %v2140, %v2142
        %vm2146 = vc.u32 %v2140, %v2142
        %v2147 = vadd.s32 %v2143, 1
        %v2148 = vsel %vm2146, %v2147, %v2143
        %v2149 = vadd.s32 %v2144, %v2148
        %v2150 = vadd.s32 %v2149, 536870912
        %v2151 = vshrl.u32 %v2150, 30
        %v2152 = vshll.u32 %v2151, 30
        %v2153 = vsub.s32 %v2149, %v2152
        %vm2154 = vcmp.lt.s32.totalorder %v2153, 0
        %v2155 = vsub.s32 0, %v2153
        %v2156 = vsel %vm2154, %v2155, %v2153
        %v2157 = vclz %v2156
        %v2158 = vsub.s32 %v2157, 2
        %vm2159 = vcmp.gt.s32.totalorder 0, %v2158
        %v2160 = vsel %vm2159, 0, %v2158
        %v2161 = vsub.s32 32, %v2160
        %v2162 = vshll.u32 %v2153, %v2160
        %v2163 = vshrl.u32 %v2145, %v2161
        %v2164 = vor.u32 %v2162, %v2163
        %v2165 = vsub.s32 4294967266, %v2160
        %v2166 = vadd.s32 %v2165, 127
        %v2167 = vshll.u32 %v2166, 23
        %v2168 = vor.u32 4788187, %v2167
        %v2169 = vand.u32 2147483647, %v2168
        %v2171 = vcvt.s32.f32 %v2164
        %v2172 = vmul.f32 %v2171, %v2169
        %v2173 = vxor.u32 %v2172, 2147483648
        %v2174 = vsel %vm2091, %v2173, %v2172
        %v2175 = vsub.s32 4, %v2151
        %v2176 = vsel %vm2091, %v2175, %v2151
        %v2177 = vsel %vm2090, %v1463, %v2174
        %v2178 = vsel %vm2090, 0, %v2176
        %v2179 = vcosq.f32.pop %v2177
        %v2180 = vsinq.f32.pop %v2177
        %vm2181 = vweird.f32 %v1463
        %v2182 = vadd.s32 %v2178, 3
        %v2183 = vand.u32 %v2182, 3
        %vm2184 = vcmp.lt.s32.totalorder %v2183, 2
        %vm2185 = vcmp.eq.s32.totalorder %v2183, 0
        %v2186 = vxor.u32 %v2180, 2147483648
        %v2187 = vsel %vm2185, %v2179, %v2186
        %vm2188 = vcmp.eq.s32.totalorder %v2183, 2
        %v2189 = vxor.u32 %v2179, 2147483648
        %v2190 = vsel %vm2188, %v2189, %v2180
        %v2191 = vsel %vm2184, %v2187, %v2190
        %v2192 = vsel %vm2181, nan, %v2191
        %v2193 = vand.u32 2147483647, %v1464
        %vm2194 = vcmp.le.f32.partialorder %v2193, 0.7853982
        %vm2195 = vcmp.lt.s32.totalorder %v1464, 0
        %v2196 = vand.u32 %v1464, 2139095040
        %v2197 = vshrl.u32 %v2196, 23
        %v2198 = vsub.s32 %v2197, 127
        %v2199 = vand.u32 2147483647, %v1464
        %v2200 = vand.u32 %v2199, 8388607
        %v2201 = vor.u32 %v2200, 8388608
        %v2202 = vsub.s32 0, %v2201
        %v2203 = vadd.s32 %v2198, 1
        %vm2204 = vcmp.gt.s32.totalorder %v2203, 0
        %v2205 = vsel %vm2204, %v2203, 0
        %v2206 = vshrl.u32 %v2205, 5
        %v2207 = vand.u32 %v2205, 31
        %v2208 = vsub.s32 32, %v2207
        %v2209 = vshrl.u32 683565275, %v2208
        %v2210 = vshll.u32 683565275, %v2207
        %v2211 = vshrl.u32 2475754826, %v2208
        %v2212 = vor.u32 %v2210, %v2211
        %v2213 = vshll.u32 2475754826, %v2207
        %v2214 = vshrl.u32 2131351028, %v2208
        %v2215 = vor.u32 %v2213, %v2214
        %v2216 = vshll.u32 2131351028, %v2207
        %v2217 = vshrl.u32 2102212464, %v2208
        %v2218 = vor.u32 %v2216, %v2217
        %v2219 = vshll.u32 2102212464, %v2207
        %v2220 = vshrl.u32 920167782, %v2208
        %v2221 = vor.u32 %v2219, %v2220
        %v2222 = vshll.u32 920167782, %v2207
        %v2223 = vshrl.u32 1326507024, %v2208
        %v2224 = vor.u32 %v2222, %v2223
        %vm2225 = vcmp.lt.s32.totalorder %v2206, 1
        %vm2226 = vcmp.lt.s32.totalorder %v2206, 2
        %vm2227 = vcmp.lt.s32.totalorder %v2206, 3
        %vm2228 = vcmp.lt.s32.totalorder %v2206, 4
        %v2229 = vsel %vm2225, %v2209, %v2212
        %v2230 = vsel %vm2228, %v2218, 2102212464
        %v2231 = vsel %vm2227, %v2215, %v2230
        %v2232 = vsel %vm2226, %v2229, %v2231
        %v2233 = vsel %vm2225, %v2212, %v2215
        %v2234 = vsel %vm2228, %v2221, 920167782
        %v2235 = vsel %vm2227, %v2218, %v2234
        %v2236 = vsel %vm2226, %v2233, %v2235
        %v2237 = vsel %vm2225, %v2215, %v2218
        %v2238 = vsel %vm2228, %v2224, 1326507024
        %v2239 = vsel %vm2227, %v2221, %v2238
        %v2240 = vsel %vm2226, %v2237, %v2239
        %v2241 = vshll.u32 %v2201, 8
        %v2242 = vmul.u32.u64.compose %v2241, %v2240
        %v2243 = vextract.low.u32 %v2242
        %v2244 = vextract.high.u32 %v2242
        %v2245 = vmul.u32.u64.compose %v2241, %v2236
        %v2246 = vextract.low.u32 %v2245
        %v2247 = vextract.high.u32 %v2245
        %v2248 = vmul.u32 %v2241, %v2232
        %v2249 = vadd.s32 %v2244, %v2246
        %vm2250 = vc.u32 %v2244, %v2246
        %v2251 = vadd.s32 %v2247, 1
        %v2252 = vsel %vm2250, %v2251, %v2247
        %v2253 = vadd.s32 %v2248, %v2252
        %v2254 = vadd.s32 %v2253, 536870912
        %v2255 = vshrl.u32 %v2254, 30
        %v2256 = vshll.u32 %v2255, 30
        %v2257 = vsub.s32 %v2253, %v2256
        %vm2258 = vcmp.lt.s32.totalorder %v2257, 0
        %v2259 = vsub.s32 0, %v2257
        %v2260 = vsel %vm2258, %v2259, %v2257
        %v2261 = vclz %v2260
        %v2262 = vsub.s32 %v2261, 2
        %vm2263 = vcmp.gt.s32.totalorder 0, %v2262
        %v2264 = vsel %vm2263, 0, %v2262
        %v2265 = vsub.s32 32, %v2264
        %v2266 = vshll.u32 %v2257, %v2264
        %v2267 = vshrl.u32 %v2249, %v2265
        %v2268 = vor.u32 %v2266, %v2267
        %v2269 = vsub.s32 4294967266, %v2264
        %v2270 = vadd.s32 %v2269, 127
        %v2271 = vshll.u32 %v2270, 23
        %v2272 = vor.u32 4788187, %v2271
        %v2273 = vand.u32 2147483647, %v2272
        %v2275 = vcvt.s32.f32 %v2268
        %v2276 = vmul.f32 %v2275, %v2273
        %v2277 = vxor.u32 %v2276, 2147483648
        %v2278 = vsel %vm2195, %v2277, %v2276
        %v2279 = vsub.s32 4, %v2255
        %v2280 = vsel %vm2195, %v2279, %v2255
        %v2281 = vsel %vm2194, %v1464, %v2278
        %v2282 = vsel %vm2194, 0, %v2280
        %v2283 = vcosq.f32.pop %v2281
        %v2284 = vsinq.f32.pop %v2281
        %vm2285 = vweird.f32 %v1464
        %v2286 = vadd.s32 %v2282, 3
        %v2287 = vand.u32 %v2286, 3
        %vm2288 = vcmp.lt.s32.totalorder %v2287, 2
        %vm2289 = vcmp.eq.s32.totalorder %v2287, 0
        %v2290 = vxor.u32 %v2284, 2147483648
        %v2291 = vsel %vm2289, %v2283, %v2290
        %vm2292 = vcmp.eq.s32.totalorder %v2287, 2
        %v2293 = vxor.u32 %v2283, 2147483648
        %v2294 = vsel %vm2292, %v2293, %v2284
        %v2295 = vsel %vm2288, %v2291, %v2294
        %v2296 = vsel %vm2285, nan, %v2295
        %s2297 = scalar_lea.vmem %s336, 8
        %v2298 = vld [vmem:[%s2297] sm:$0xff]
        %2299 = vmatprep.subr.mxu0 0.0
        %2300 = vmatpush1.msra.mxu0 0.0
        %2301 = vmatprep.subr.mxu0 0.0
        %2302 = vmatpush1.msra.mxu0 0.0
        %2303 = vmatprep.subr.mxu0 0.0
        %2304 = vmatpush1.msra.mxu0 0.0
        %2305 = vmatprep.subr.mxu0 0.0
        %2306 = vmatpush1.msra.mxu0 0.0
        %2307 = vmatprep.subr.mxu0 0.0
        %2308 = vmatpush1.msra.mxu0 0.0
        %2309 = vmatprep.subr.mxu0 0.0
        %2310 = vmatpush1.msra.mxu0 0.0
        %2311 = vmatprep.subr.mxu0 0.0
        %2312 = vmatpush1.msra.mxu0 0.0
        %2313 = vmatprep.subr.mxu0 0.0
        %2314 = vmatpush1.msra.mxu0 0.0
        %2315 = vmatprep.subr.mxu0 0.0
        %2316 = vmatpush1.msra.mxu0 0.0
        %2317 = vmatprep.subr.mxu0 0.0
        %2318 = vmatpush1.msra.mxu0 0.0
        %2319 = vmatprep.subr.mxu0 0.0
        %2320 = vmatpush1.msra.mxu0 0.0
        %2321 = vmatprep.subr.mxu0 0.0
        %2322 = vmatpush1.msra.mxu0 0.0
        %2323 = vmatprep.subr.mxu0 %v2296
        %2324 = vmatpush1.msra.mxu0 %v2192
        %2325 = vmatprep.subr.mxu0 %v2088
        %2326 = vmatpush1.msra.mxu0 %v1984
        %2327 = vmatprep.subr.mxu0 %v1880
        %2328 = vmatpush1.msra.mxu0 %v1776
        %2329 = vmatprep.subr.mxu0 %v1672
        %2330 = vmatpush1.msra.mxu0 %v1568
        %2331 = vmatprep.subr.mxu0 0.0
        %2332 = vmatpush2.msra.mxu0 0.0
        %2333 = vmatprep.subr.mxu0 0.0
        %2334 = vmatpush2.msra.mxu0 0.0
        %2335 = vmatprep.subr.mxu0 0.0
        %2336 = vmatpush2.msra.mxu0 0.0
        %2337 = vmatprep.subr.mxu0 0.0
        %2338 = vmatpush2.msra.mxu0 0.0
        %2339 = vmatprep.subr.mxu0 0.0
        %2340 = vmatpush2.msra.mxu0 0.0
        %2341 = vmatprep.subr.mxu0 0.0
        %2342 = vmatpush2.msra.mxu0 0.0
        %2343 = vmatprep.subr.mxu0 0.0
        %2344 = vmatpush2.msra.mxu0 0.0
        %2345 = vmatprep.subr.mxu0 0.0
        %2346 = vmatpush2.msra.mxu0 0.0
        %2347 = vmatprep.subr.mxu0 0.0
        %2348 = vmatpush2.msra.mxu0 0.0
        %2349 = vmatprep.subr.mxu0 0.0
        %2350 = vmatpush2.msra.mxu0 0.0
        %2351 = vmatprep.subr.mxu0 0.0
        %2352 = vmatpush2.msra.mxu0 0.0
        %2353 = vmatprep.subr.mxu0 0.0
        %2354 = vmatpush2.msra.mxu0 0.0
        %2355 = vmatprep.subr.mxu0 0.0
        %2356 = vmatpush2.msra.mxu0 0.0
        %2357 = vmatprep.subr.mxu0 0.0
        %2358 = vmatpush2.msra.mxu0 0.0
        %2359 = vmatprep.subr.mxu0 0.0
        %2360 = vmatpush2.msra.mxu0 0.0
        %2361 = vmatprep.subr.mxu0 0.0
        %2362 = vmatpush2.msra.mxu0 0.0
        %2363 = vmatprep.mubr.f32.mxu0 0.0
        %2364 = vmatmul.mubr.f32.gmra.mxu0 %v1265
        %v2365 = vpop.f32.mrf.mxu0
        %v2366 = vadd.f32 0.0, %v2365
        %v2367 = vpop.f32.mrf.mxu0
        %v2368 = vadd.f32 0.0, %v2367
        %2369 = vdwg.mxu0
        %v2371 = vcombine.high %v2298, %v2298
        %v2372 = vsel %vm1344, %v2298, 0
        %v2374 = vsel %vm1344, %v2371, 0
        %2376 = vmatprep.subr.mxu0 0.0
        %2377 = vmatpush1.msra.mxu0 0.0
        %2378 = vmatprep.subr.mxu0 0.0
        %2379 = vmatpush1.msra.mxu0 0.0
        %2380 = vmatprep.subr.mxu0 0.0
        %2381 = vmatpush1.msra.mxu0 0.0
        %2382 = vmatprep.subr.mxu0 0.0
        %2383 = vmatpush1.msra.mxu0 0.0
        %2384 = vmatprep.subr.mxu0 0.0
        %2385 = vmatpush1.msra.mxu0 0.0
        %2386 = vmatprep.subr.mxu0 0.0
        %2387 = vmatpush1.msra.mxu0 0.0
        %2388 = vmatprep.subr.mxu0 0.0
        %2389 = vmatpush1.msra.mxu0 0.0
        %2390 = vmatprep.subr.mxu0 0.0
        %2391 = vmatpush1.msra.mxu0 0.0
        %2392 = vmatprep.subr.mxu0 0.0
        %2393 = vmatpush1.msra.mxu0 0.0
        %2394 = vmatprep.subr.mxu0 0.0
        %2395 = vmatpush1.msra.mxu0 0.0
        %2396 = vmatprep.subr.mxu0 0.0
        %2397 = vmatpush1.msra.mxu0 0.0
        %2398 = vmatprep.subr.mxu0 0.0
        %2399 = vmatpush1.msra.mxu0 0.0
        %2400 = vmatprep.subr.mxu0 0.0
        %2401 = vmatpush1.msra.mxu0 0.0
        %2402 = vmatprep.subr.mxu0 0.0
        %2403 = vmatpush1.msra.mxu0 0.0
        %2404 = vmatprep.subr.mxu0 0.0
        %2405 = vmatpush1.msra.mxu0 0.0
        %2406 = vmatprep.subr.mxu0 %v2374
        %2407 = vmatpush1.msra.mxu0 %v2372
        %2408 = vmatprep.subr.mxu0 0.0
        %2409 = vmatpush2.msra.mxu0 0.0
        %2410 = vmatprep.subr.mxu0 0.0
        %2411 = vmatpush2.msra.mxu0 0.0
        %2412 = vmatprep.subr.mxu0 0.0
        %2413 = vmatpush2.msra.mxu0 0.0
        %2414 = vmatprep.subr.mxu0 0.0
        %2415 = vmatpush2.msra.mxu0 0.0
        %2416 = vmatprep.subr.mxu0 0.0
        %2417 = vmatpush2.msra.mxu0 0.0
        %2418 = vmatprep.subr.mxu0 0.0
        %2419 = vmatpush2.msra.mxu0 0.0
        %2420 = vmatprep.subr.mxu0 0.0
        %2421 = vmatpush2.msra.mxu0 0.0
        %2422 = vmatprep.subr.mxu0 0.0
        %2423 = vmatpush2.msra.mxu0 0.0
        %2424 = vmatprep.subr.mxu0 0.0
        %2425 = vmatpush2.msra.mxu0 0.0
        %2426 = vmatprep.subr.mxu0 0.0
        %2427 = vmatpush2.msra.mxu0 0.0
        %2428 = vmatprep.subr.mxu0 0.0
        %2429 = vmatpush2.msra.mxu0 0.0
        %2430 = vmatprep.subr.mxu0 0.0
        %2431 = vmatpush2.msra.mxu0 0.0
        %2432 = vmatprep.subr.mxu0 0.0
        %2433 = vmatpush2.msra.mxu0 0.0
        %2434 = vmatprep.subr.mxu0 0.0
        %2435 = vmatpush2.msra.mxu0 0.0
        %2436 = vmatprep.subr.mxu0 0.0
        %2437 = vmatpush2.msra.mxu0 0.0
        %2438 = vmatprep.subr.mxu0 0.0
        %2439 = vmatpush2.msra.mxu0 0.0
        %2440 = vmatprep.mubr.f32.mxu0 0.0
        %2441 = vmatmul.mubr.f32.gmra.mxu0 %v1342
        %v2442 = vpop.f32.mrf.mxu0
        %v2443 = vadd.f32 %v2366, %v2442
        %v2444 = vpop.f32.mrf.mxu0
        %v2445 = vadd.f32 %v2368, %v2444
        %2446 = vdwg.mxu0
        %s2447 = sadd.s32 %s1420, 1
        %s2448 = smul.u32 %s2447, 4
        %s2449 = scalar_lea.vmem %s2, %s2448
        %v2450 = vld [vmem:[%s2449] sm:$0xf]
        %2452 = vset.pattern.permute.xlu0 0
        %2453 = vperm.xlu0 %2452, %v2450
        %v2454 = vpop.permute.xlu0 %2453
        %v2456 = vadd.f32 %v2443, %v2454
        %v2457 = vadd.f32 %v2445, %v2454
        %v2460 = vcombine.low %v2456, %v2457
        %s2462 = scalar_lea.vmem %s326, 8 [#allocation2]
        %2463 = vst [vmem:[%s2462] sm:$0xff] %v2460
        %s2464 = sand.u32 %s204, 1
        %s2465 = scalar_lea.sflag [#allocation3], %s2464
        %s2466 = sand.u32 %s204, 1
        %s2467 = smul.addr %s2466, 16
        %s2468 = scalar_lea.vmem [#allocation2], %s2467
        // Predicated region
        $region49: #{tpu_custom_call.1} parent=47 // pred_check
          %p2469 = pneg %p214
        $region50: #{tpu_custom_call.1} parent=47 // pred_check_branch
          %2471 = sbr.rel (%p2469) target = $region52
        $region51: #{tpu_custom_call.1} parent=47 // pred_region
          %s2472 = smul.u32 2, %s25
          %s2473 = smul.u32 2, %s26
          %s2475 = ssub.s32 256, 256
          %2476 = vsyncadd %s2465, %s2475
          %s2477 = smul.addr %s2472, 2
          %s2478 = sadd.s32 %s2473, %s2477
          %s2479 = smul.addr %s2478, 64
          %s2480 = scalar_lea.hbm %s7, %s2479
          %s2481 = sshll.u32 %s2468, 4
          %s2482 = int_to_ptr.vmem [resolvable:$true] %s2481
          %2487 = dma.vmem_to_hbm [thread:$0]  %s2482, 256, %s2480, %s2465, 128, 128, 8
        $region52: #{tpu_custom_call.1} parent=47 // pred_fallthru
          _
      $region48: #{tpu_custom_call.1} parent=5 // pred_fallthru
        _
      %p2488 = scmp.le.s32.totalorder 2, %s16
      // Predicated region
      $region53: #{tpu_custom_call.1} parent=5 // pred_check
        %p2489 = pneg %p2488
      $region54: #{tpu_custom_call.1} parent=5 // pred_check_branch
        %2491 = sbr.rel (%p2489) target = $region56
      $region55: #{tpu_custom_call.1} parent=5 // pred_region
        %s2492 = ssub.s32 %s16, 2
        // Predicated region
        $region57: #{tpu_custom_call.1} parent=55 // pred_check
          %p2493 = pneg %p220
        $region58: #{tpu_custom_call.1} parent=55 // pred_check_branch
          %2495 = sbr.rel (%p2493) target = $region60
        $region59: #{tpu_custom_call.1} parent=55 // pred_region
          %s2496 = sand.u32 %s205, 1
          %s2497 = scalar_lea.sflag [#allocation3], %s2496
          %s2498 = sand.u32 %s205, 1
          %s2499 = smul.addr %s2498, 16
          %s2500 = scalar_lea.vmem [#allocation2], %s2499
          %2501 = dma.done %s2497, 256
        $region60: #{tpu_custom_call.1} parent=55 // pred_fallthru
          _
      $region56: #{tpu_custom_call.1} parent=5 // pred_fallthru
        _
    $region6: #{tpu_custom_call.1} parent=1 // loop_footer
      %s20 = sadd.s32 1, %s16
    $region7: #{tpu_custom_call.1} parent=1 // loop_footer_branch
      %15 = sbr.rel target = $region3
    $region8: #{tpu_custom_call.1} parent=1 // loop_exit
      _
    %2502 = vsyncpa [#allocation3], 1
    %s2503 = scalar_lea.sflag [#allocation3], 1
    %2504 = vsyncpa %s2503, 1

</llo_original>
